<compile_context>
chip_gen: v5e
topology: v5e:2x2
jax: 0.10.0
libtpu: 0.0.40
codegen_flags: <defaults>
</compile_context>

<pallas_src>
import functools

import jax
import jax.numpy as jnp
from jax.experimental import pallas as pl
from jax.experimental.pallas import tpu as pltpu


def _round_up(a: int, m: int) -> int:
    return ((a + m - 1) // m) * m


def _filter_decoder_kernel(x_ref, w_ref, b_ref, ysem_ref,
                           scores_ref, psum_ref, *, n_total):
    tile_n = x_ref.shape[0]

    # Linear(hit_features -> 1): VPU multiply + lane reduce (no MXU).
    xf = x_ref[...].astype(jnp.float32)                       # (tile_n, H)
    z = jnp.sum(xf * w_ref[...], axis=-1, keepdims=True)      # (tile_n, 1)
    z = z + b_ref[0]                                          # bias from SMEM

    # Sigmoid + BCE in logits space, sharing one exp:
    #   e          = exp(-|z|)                         (never overflows)
    #   sigmoid(z) = r          if z >= 0 else e * r,  r = 1 / (1 + e)
    #   BCE(p, y)  = softplus(z) - y*z,  softplus(z) = max(z, 0) + log(1 + e)
    e = jnp.exp(-jnp.abs(z))
    r = pl.reciprocal(1.0 + e, approx=False)   # exact: p is returned to the user
    p = jnp.where(z >= 0, r, e * r)
    scores_ref[...] = p.astype(scores_ref.dtype)

    y = (ysem_ref[...] != -1).astype(jnp.float32)             # (tile_n, 1)
    bce = jnp.maximum(z, 0.0) + jnp.log(1.0 + e) - y * z

    # Mask rows past the true number of hits (last, possibly partial tile).
    row = (jax.lax.broadcasted_iota(jnp.int32, (tile_n, 1), 0)
           + pl.program_id(0) * tile_n)
    bce = jnp.where(row < n_total, bce, 0.0)

    # Per-tile partial sum written to this tile's own output slot: no cross-step
    # accumulator, so the grid axis is safely "parallel" and summation accuracy
    # improves (pairwise-ish) for large N.
    psum_ref[...] = jnp.broadcast_to(jnp.sum(bce), (1, 1, 1)).astype(jnp.float32)


def filter_decoder_forward(x, w, b, temp, y_semantic, *, tile_n=4096):
    """Returns (loss [scalar], x_filter [N]).

    x: (N, H) hit embeddings, streamed in its own dtype (bf16 recommended).
    w: (H, 1) linear weight; b: (1,) bias; temp: scalar temperature.
    y_semantic: (N,) int semantic labels (-1 == noise).
    """
    n, h = x.shape

    # Largest tile that fits the problem; keep it sublane (8) aligned.
    tile_n = int(max(8, min(_round_up(tile_n, 8), _round_up(n, 8))))
    num_tiles = pl.cdiv(n, tile_n)

    w_row = jnp.asarray(w, jnp.float32).reshape(1, h)
    b_s = jnp.asarray(b, jnp.float32).reshape(1)
    ysem = jnp.asarray(y_semantic, jnp.int32).reshape(n, 1)
    temp_s = jnp.asarray(temp, jnp.float32).reshape(())

    kernel = functools.partial(_filter_decoder_kernel, n_total=n)

    scores, psums = pl.pallas_call(
        kernel,
        out_shape=(
            jax.ShapeDtypeStruct((n, 1), jnp.float32),             # x_filter
            jax.ShapeDtypeStruct((num_tiles, 1, 1), jnp.float32),  # partial BCE sums
        ),
        grid_spec=pltpu.PrefetchScalarGridSpec(
            num_scalar_prefetch=0,
            grid=(num_tiles,),
            in_specs=[
                pl.BlockSpec((tile_n, h), lambda i: (i, 0)),            # x tile
                pl.BlockSpec((1, h), lambda i: (0, 0)),                 # W row (resident)
                pl.BlockSpec(memory_space=pltpu.MemorySpace.SMEM),      # bias scalar
                pl.BlockSpec((tile_n, 1), lambda i: (i, 0)),            # y_semantic tile
            ],
            out_specs=[
                pl.BlockSpec((tile_n, 1), lambda i: (i, 0)),            # scores tile
                pl.BlockSpec((1, 1, 1), lambda i: (i, 0, 0)),           # per-tile partial
            ],
        ),
        compiler_params=pltpu.CompilerParams(
            dimension_semantics=("parallel",),
            vmem_limit_bytes=32 * 1024 * 1024,
        ),
    )(x, w_row, b_s, ysem)

    # Final mean + temperature weighting (tiny, kept outside the kernel so the
    # grid stays embarrassingly parallel).
    mean_bce = jnp.sum(psums) / jnp.float32(n)
    loss = 2.0 * jnp.exp(-temp_s) * mean_bce + temp_s
    return loss, scores.reshape(n)


def _reference(x, w, b, temp, y_semantic):
    """Faithful torch semantics: sigmoid -> BCELoss (log clamped at -100)."""
    xf = x.astype(jnp.float32)
    p = jax.nn.sigmoid(xf @ w.astype(jnp.float32) + b.astype(jnp.float32)).reshape(-1)
    y = (y_semantic != -1).astype(jnp.float32)
    logp = jnp.maximum(jnp.log(p), -100.0)
    log1mp = jnp.maximum(jnp.log(1.0 - p), -100.0)
    bce = jnp.mean(-(y * logp + (1.0 - y) * log1mp))
    loss = 2.0 * jnp.exp(-temp) * bce + temp
    return loss, p


if __name__ == "__main__":
    key = jax.random.PRNGKey(0)
    k1, k2, k3, k4, k5 = jax.random.split(key, 5)

    hit_features = 32      # hit node embedding width
    n_hits = 1000          # number of hit nodes (deliberately NOT a tile multiple)

    # nn.Linear(hit_features, 1)-style init.
    bound = 1.0 / float(hit_features) ** 0.5
    w = jax.random.uniform(k1, (hit_features, 1), jnp.float32, -bound, bound)
    b = jax.random.uniform(k2, (1,), jnp.float32, -bound, bound)
    temp = jnp.zeros((), jnp.float32)            # nn.Parameter(torch.tensor(0.0))

    # Hit embeddings streamed as bf16 (halves HBM traffic); labels with -1 = noise.
    x = jax.random.normal(k3, (n_hits, hit_features), jnp.float32).astype(jnp.bfloat16)
    y_semantic = jnp.where(jax.random.uniform(k4, (n_hits,)) < 0.3,
                           -1,
                           jax.random.randint(k5, (n_hits,), 0, 5)).astype(jnp.int32)

    # Small tile here to exercise multiple grid steps plus the masked partial tile.
    loss, x_filter = filter_decoder_forward(x, w, b, temp, y_semantic, tile_n=256)
    jax.block_until_ready((loss, x_filter))

    ref_loss, ref_scores = _reference(x, w, b, temp, y_semantic)
    assert x_filter.shape == (n_hits,)
    assert jnp.allclose(x_filter, ref_scores, atol=1e-4, rtol=1e-4), "scores mismatch"
    assert jnp.allclose(loss, ref_loss, atol=1e-4, rtol=1e-4), "loss mismatch"

    # TODO(synk): torchmetrics Recall/Precision/ConfusionMatrix, PyG Batch
    # _slice_dict/_inc_dict bookkeeping, and matplotlib/TensorBoard plotting are
    # host-side logging utilities with no Pallas equivalent; only the forward
    # compute (loss + x_filter) is kernelized.
    print("KERNEL_OK")
</pallas_src>

<mosaic_0001>
module attributes {stable_mosaic.version = 11 : i64} {
  func.func @_filter_decoder_kernel(%arg0: i32, %arg1: memref<256x32xbf16, #tpu.memory_space<vmem>>, %arg2: memref<1x32xf32, #tpu.memory_space<vmem>>, %arg3: memref<1xf32, #tpu.memory_space<smem>>, %arg4: memref<256x1xi32, #tpu.memory_space<vmem>>, %arg5: memref<256x1xf32, #tpu.memory_space<vmem>>, %arg6: memref<1x1x1xf32, #tpu.memory_space<vmem>>) attributes {dimension_semantics = [#tpu.dimension_semantics<parallel>], iteration_bounds = array<i64: 4>, scalar_prefetch = 0 : i64, scratch_operands = 0 : i64, tpu.core_type = #tpu.core_type<tc>, window_params = [{transform_indices = @transform_0, window_bounds = array<i64: 256, 32>}, {pipeline_mode = #tpu.pipeline_mode<synchronous>, transform_indices = @transform_1, window_bounds = array<i64: 1, 32>}, {transform_indices = @transform_2, window_bounds = array<i64: 1>}, {transform_indices = @transform_3, window_bounds = array<i64: 256, 1>}, {transform_indices = @transform_4, window_bounds = array<i64: 256, 1>}, {transform_indices = @transform_5, window_bounds = array<i64: 1, 1, 1>}]} {
    %c0 = arith.constant 0 : index
    %c0_0 = arith.constant 0 : index
    %0 = vector.load %arg1[%c0, %c0_0] : memref<256x32xbf16, #tpu.memory_space<vmem>>, vector<256x32xbf16>
    %1 = arith.extf %0 : vector<256x32xbf16> to vector<256x32xf32>
    %c0_1 = arith.constant 0 : index
    %c0_2 = arith.constant 0 : index
    %2 = vector.load %arg2[%c0_1, %c0_2] : memref<1x32xf32, #tpu.memory_space<vmem>>, vector<1x32xf32>
    %3 = vector.broadcast %2 : vector<1x32xf32> to vector<256x32xf32>
    %4 = arith.mulf %1, %3 : vector<256x32xf32>
    %cst = arith.constant dense<0.000000e+00> : vector<256xf32>
    %5 = vector.multi_reduction <add>, %4, %cst [1] : vector<256x32xf32> to vector<256xf32>
    %6 = vector.shape_cast %5 : vector<256xf32> to vector<256x1xf32>
    %c0_3 = arith.constant 0 : index
    %7 = memref.load %arg3[%c0_3] : memref<1xf32, #tpu.memory_space<smem>>
    %8 = vector.broadcast %7 : f32 to vector<256x1xf32>
    %9 = arith.addf %6, %8 : vector<256x1xf32>
    %10 = math.absf %9 : vector<256x1xf32>
    %cst_4 = arith.constant 0.000000e+00 : f32
    %11 = vector.broadcast %cst_4 : f32 to vector<256x1xf32>
    %12 = arith.subf %11, %10 : vector<256x1xf32>
    %13 = math.exp %12 : vector<256x1xf32>
    %cst_5 = arith.constant 1.000000e+00 : f32
    %14 = vector.broadcast %cst_5 : f32 to vector<256x1xf32>
    %15 = arith.addf %14, %13 : vector<256x1xf32>
    %16 = tpu.reciprocal %15 : vector<256x1xf32> -> vector<256x1xf32>
    %cst_6 = arith.constant 0.000000e+00 : f32
    %17 = vector.broadcast %cst_6 : f32 to vector<256x1xf32>
    %18 = arith.cmpf oge, %9, %17 : vector<256x1xf32>
    %19 = arith.mulf %13, %16 : vector<256x1xf32>
    %20 = arith.select %18, %16, %19 : vector<256x1xi1>, vector<256x1xf32>
    %c0_7 = arith.constant 0 : index
    %c0_8 = arith.constant 0 : index
    %21 = vector.load %arg5[%c0_7, %c0_8] : memref<256x1xf32, #tpu.memory_space<vmem>>, vector<256x1xf32>
    tpu.vector_store %arg5[%c0_7, %c0_8], %20 {strides = array<i32>} : memref<256x1xf32, #tpu.memory_space<vmem>>, vector<256x1xf32>,
    %c0_9 = arith.constant 0 : index
    %c0_10 = arith.constant 0 : index
    %22 = vector.load %arg4[%c0_9, %c0_10] : memref<256x1xi32, #tpu.memory_space<vmem>>, vector<256x1xi32>
    %c-1_i32 = arith.constant -1 : i32
    %23 = vector.broadcast %c-1_i32 : i32 to vector<256x1xi32>
    %24 = arith.cmpi ne, %22, %23 : vector<256x1xi32>
    %25 = arith.extui %24 : vector<256x1xi1> to vector<256x1xi32>
    %26 = arith.sitofp %25 : vector<256x1xi32> to vector<256x1xf32>
    %cst_11 = arith.constant 0.000000e+00 : f32
    %27 = vector.broadcast %cst_11 : f32 to vector<256x1xf32>
    %28 = arith.maximumf %9, %27 : vector<256x1xf32>
    %cst_12 = arith.constant 1.000000e+00 : f32
    %29 = vector.broadcast %cst_12 : f32 to vector<256x1xf32>
    %30 = arith.addf %29, %13 : vector<256x1xf32>
    %31 = math.log %30 : vector<256x1xf32>
    %32 = arith.addf %28, %31 : vector<256x1xf32>
    %33 = arith.mulf %26, %9 : vector<256x1xf32>
    %34 = arith.subf %32, %33 : vector<256x1xf32>
    %35 = tpu.iota {dimensions = array<i32: 0>} : vector<256x1xi32>
    %c256_i32 = arith.constant 256 : i32
    %36 = arith.muli %arg0, %c256_i32 : i32
    %37 = vector.broadcast %36 : i32 to vector<256x1xi32>
    %38 = arith.addi %35, %37 : vector<256x1xi32>
    %c1000_i32 = arith.constant 1000 : i32
    %39 = vector.broadcast %c1000_i32 : i32 to vector<256x1xi32>
    %40 = arith.cmpi slt, %38, %39 : vector<256x1xi32>
    %cst_13 = arith.constant 0.000000e+00 : f32
    %41 = vector.broadcast %cst_13 : f32 to vector<256x1xf32>
    %42 = arith.select %40, %34, %41 : vector<256x1xi1>, vector<256x1xf32>
    %43 = vector.shape_cast %42 : vector<256x1xf32> to vector<1x256x1xf32>
    %cst_14 = arith.constant dense<0.000000e+00> : vector<1xf32>
    %44 = vector.multi_reduction <add>, %43, %cst_14 [1, 2] : vector<1x256x1xf32> to vector<1xf32>
    %45 = vector.shape_cast %44 : vector<1xf32> to vector<1x1x1xf32>
    %46 = vector.extract %45[0, 0, 0] : f32 from vector<1x1x1xf32>
    %47 = vector.broadcast %46 : f32 to vector<1x1x1xf32>
    %c0_15 = arith.constant 0 : index
    %c0_16 = arith.constant 0 : index
    %c0_17 = arith.constant 0 : index
    %48 = vector.load %arg6[%c0_15, %c0_16, %c0_17] : memref<1x1x1xf32, #tpu.memory_space<vmem>>, vector<1x1x1xf32>
    tpu.vector_store %arg6[%c0_15, %c0_16, %c0_17], %47 {strides = array<i32>} : memref<1x1x1xf32, #tpu.memory_space<vmem>>, vector<1x1x1xf32>,
    return
  }
  func.func @transform_0(%arg0: i32) -> (i32, i32) {
    %c0_i32 = arith.constant 0 : i32
    %c0_i32_0 = arith.constant 0 : i32
    return %arg0, %c0_i32 : i32, i32
  }
  func.func @transform_1(%arg0: i32) -> (i32, i32) {
    %c0_i32 = arith.constant 0 : i32
    %c0_i32_0 = arith.constant 0 : i32
    %c0_i32_1 = arith.constant 0 : i32
    return %c0_i32, %c0_i32_0 : i32, i32
  }
  func.func @transform_2(%arg0: i32) -> i32 {
    %c0_i32 = arith.constant 0 : i32
    %c0_i32_0 = arith.constant 0 : i32
    return %c0_i32 : i32
  }
  func.func @transform_3(%arg0: i32) -> (i32, i32) {
    %c0_i32 = arith.constant 0 : i32
    %c0_i32_0 = arith.constant 0 : i32
    return %arg0, %c0_i32 : i32, i32
  }
  func.func @transform_4(%arg0: i32) -> (i32, i32) {
    %c0_i32 = arith.constant 0 : i32
    %c0_i32_0 = arith.constant 0 : i32
    return %arg0, %c0_i32 : i32, i32
  }
  func.func @transform_5(%arg0: i32) -> (i32, i32, i32) {
    %c0_i32 = arith.constant 0 : i32
    %c0_i32_0 = arith.constant 0 : i32
    %c0_i32_1 = arith.constant 0 : i32
    return %arg0, %c0_i32, %c0_i32_0 : i32, i32, i32
  }
}

</mosaic_0001>

<llo_original>
// kernel: tpu_custom_call.1
$region0: #{tpu_custom_call.1}
  #allocation0 [shape = 'u32[]', space=smem, size = 0x4, offset = 0x4, fixed_abs, tag = 'smem constant byte address 0x4 - core index']
  #allocation1 [shape = 'u32[72,128]{1,0:T(1,128)}', space=vmem, size = 0x9000, scoped, tag = 'internal scratch']
  #allocation2 [shape = 'f32[1]{0:T(128)S(6)}', space=smem, size = 0x200, scoped, tag = 'scoped memory for tpu_custom_call.1']
  %s0 = inlined_call_operand.vmem [shape: bf16[1000,32], index: 0, kind: input, shape index: {}]
  %s1 = inlined_call_operand.vmem [shape: f32[1,32], index: 1, kind: input, shape index: {}]
  %s2 = inlined_call_operand.<no memory space> [shape: f32[1], index: 2, kind: input, shape index: {}]
  %s3 = inlined_call_operand.vmem [shape: s32[1000,1], index: 3, kind: input, shape index: {}]
  %s4 = inlined_call_operand.vmem [shape: f32[1000,1], index: 4, kind: output, shape index: {0}]
  %s5 = inlined_call_operand.vmem [shape: f32[4,1,1], index: 5, kind: output, shape index: {1}]
  %6 = xla_tuple %s4, %s5
  %s7 = sld [smem:[#allocation0]]
  $region105: #{tpu_custom_call.1} parent=0
    _
  %s9 = ssub.s32 1, %s7
  %s10 = scalar_select 0, %s9, %s7
  %11 = sst [smem:[#allocation2]] %s2
  $region1: #{tpu_custom_call.1} parent=0
    #allocation3 [shape = 'u8[262144]{0}', space=vmem, size = 0x40000, scoped, tag = 'output window, operand 0']
    loop: start=0, step=1, limit=6
    $region2: #{tpu_custom_call.1} parent=1 // loop_pre_header
      _
    $region3: #{tpu_custom_call.1} parent=1 // loop_header
      %s13 = sphi 0, %s17
      %p14 = scmp.ge.s32.totalorder %s13, 6
      %s23 = sphi 0, %s25
      %s26 = sphi 0, %s23
      %s27 = sphi 0, %s26
      %s43 = sphi 0, %s27
      %s47 = sphi 0, %s47
      %s49 = sphi 0, %s47
      %s50 = sphi 0, %s49
      %s64 = sphi 0, %s50
      %s68 = sphi 0, %s68
      %s70 = sphi 0, %s68
      %s71 = sphi 0, %s70
      %s85 = sphi 0, %s71
      %s91 = sphi 0, %s93
      %s94 = sphi 0, %s91
      %s95 = sphi 0, %s94
      %s111 = sphi 0, %s95
      %s117 = sphi 0, %s119
      %s120 = sphi 0, %s117
      %s121 = sphi 0, %s120
      %s137 = sphi 0, %s121
      %s143 = sphi 0, %s145
      %s146 = sphi 0, %s143
      %s147 = sphi 0, %s146
      %s163 = sphi 0, %s147
    $region4: #{tpu_custom_call.1} parent=1 // loop_header_branch
      %16 = sbr.rel (%p14) target = $region8
    $region5: #{tpu_custom_call.1} parent=1 // loop_body
      %s18 = ssub.s32 %s13, 1
      %s19 = ssub.s32 %s13, 2
      %s20 = sadd.s32 %s13, 1
      %s21 = ssub.s32 %s13, %s20
      %p22 = scmp.eq.s32.totalorder %s21, 0
      %s24 = sadd.s32 %s23, 1
      %s25 = scalar_select %p22, %s23, %s24
      %p28 = pneg %p22
      %p29 = scmp.eq.s32.totalorder %s13, 3
      %p30 = por %p28, %p29
      %p31 = scmp.ne.s32.totalorder %s23, %s26
      %p32 = scmp.eq.s32.totalorder %s13, 0
      %p33 = por %p31, %p32
      %p34 = scmp.ne.s32.totalorder %s23, %s26
      %p35 = scmp.eq.s32.totalorder %s18, 3
      %p36 = por %p34, %p35
      %p37 = scmp.ne.s32.totalorder %s26, %s27
      %p38 = scmp.eq.s32.totalorder %s18, 0
      %p39 = por %p37, %p38
      %p40 = scmp.ne.s32.totalorder %s26, %s27
      %p41 = scmp.eq.s32.totalorder %s19, 3
      %p42 = por %p40, %p41
      %p44 = scmp.ne.s32.totalorder %s27, %s43
      %p45 = scmp.eq.s32.totalorder %s19, 0
      %p46 = por %p44, %p45
      %s48 = sadd.s32 %s47, 1
      %p51 = scmp.eq.s32.totalorder %s13, 3
      %p52 = scmp.ne.s32.totalorder %s47, %s49
      %p53 = scmp.eq.s32.totalorder %s13, 0
      %p54 = por %p52, %p53
      %p55 = scmp.ne.s32.totalorder %s47, %s49
      %p56 = scmp.eq.s32.totalorder %s18, 3
      %p57 = por %p55, %p56
      %p58 = scmp.ne.s32.totalorder %s49, %s50
      %p59 = scmp.eq.s32.totalorder %s18, 0
      %p60 = por %p58, %p59
      %p61 = scmp.ne.s32.totalorder %s49, %s50
      %p62 = scmp.eq.s32.totalorder %s19, 3
      %p63 = por %p61, %p62
      %p65 = scmp.ne.s32.totalorder %s50, %s64
      %p66 = scmp.eq.s32.totalorder %s19, 0
      %p67 = por %p65, %p66
      %s69 = sadd.s32 %s68, 1
      %p72 = scmp.eq.s32.totalorder %s13, 3
      %p73 = scmp.ne.s32.totalorder %s68, %s70
      %p74 = scmp.eq.s32.totalorder %s13, 0
      %p75 = por %p73, %p74
      %p76 = scmp.ne.s32.totalorder %s68, %s70
      %p77 = scmp.eq.s32.totalorder %s18, 3
      %p78 = por %p76, %p77
      %p79 = scmp.ne.s32.totalorder %s70, %s71
      %p80 = scmp.eq.s32.totalorder %s18, 0
      %p81 = por %p79, %p80
      %p82 = scmp.ne.s32.totalorder %s70, %s71
      %p83 = scmp.eq.s32.totalorder %s19, 3
      %p84 = por %p82, %p83
      %p86 = scmp.ne.s32.totalorder %s71, %s85
      %p87 = scmp.eq.s32.totalorder %s19, 0
      %p88 = por %p86, %p87
      %s89 = ssub.s32 %s13, %s20
      %p90 = scmp.eq.s32.totalorder %s89, 0
      %s92 = sadd.s32 %s91, 1
      %s93 = scalar_select %p90, %s91, %s92
      %p96 = pneg %p90
      %p97 = scmp.eq.s32.totalorder %s13, 3
      %p98 = por %p96, %p97
      %p99 = scmp.ne.s32.totalorder %s91, %s94
      %p100 = scmp.eq.s32.totalorder %s13, 0
      %p101 = por %p99, %p100
      %p102 = scmp.ne.s32.totalorder %s91, %s94
      %p103 = scmp.eq.s32.totalorder %s18, 3
      %p104 = por %p102, %p103
      %p105 = scmp.ne.s32.totalorder %s94, %s95
      %p106 = scmp.eq.s32.totalorder %s18, 0
      %p107 = por %p105, %p106
      %p108 = scmp.ne.s32.totalorder %s94, %s95
      %p109 = scmp.eq.s32.totalorder %s19, 3
      %p110 = por %p108, %p109
      %p112 = scmp.ne.s32.totalorder %s95, %s111
      %p113 = scmp.eq.s32.totalorder %s19, 0
      %p114 = por %p112, %p113
      %s115 = ssub.s32 %s13, %s20
      %p116 = scmp.eq.s32.totalorder %s115, 0
      %s118 = sadd.s32 %s117, 1
      %s119 = scalar_select %p116, %s117, %s118
      %p122 = pneg %p116
      %p123 = scmp.eq.s32.totalorder %s13, 3
      %p124 = por %p122, %p123
      %p125 = scmp.ne.s32.totalorder %s117, %s120
      %p126 = scmp.eq.s32.totalorder %s13, 0
      %p127 = por %p125, %p126
      %p128 = scmp.ne.s32.totalorder %s117, %s120
      %p129 = scmp.eq.s32.totalorder %s18, 3
      %p130 = por %p128, %p129
      %p131 = scmp.ne.s32.totalorder %s120, %s121
      %p132 = scmp.eq.s32.totalorder %s18, 0
      %p133 = por %p131, %p132
      %p134 = scmp.ne.s32.totalorder %s120, %s121
      %p135 = scmp.eq.s32.totalorder %s19, 3
      %p136 = por %p134, %p135
      %p138 = scmp.ne.s32.totalorder %s121, %s137
      %p139 = scmp.eq.s32.totalorder %s19, 0
      %p140 = por %p138, %p139
      %s141 = ssub.s32 %s13, %s20
      %p142 = scmp.eq.s32.totalorder %s141, 0
      %s144 = sadd.s32 %s143, 1
      %s145 = scalar_select %p142, %s143, %s144
      %p148 = pneg %p142
      %p149 = scmp.eq.s32.totalorder %s13, 3
      %p150 = por %p148, %p149
      %p151 = scmp.ne.s32.totalorder %s143, %s146
      %p152 = scmp.eq.s32.totalorder %s13, 0
      %p153 = por %p151, %p152
      %p154 = scmp.ne.s32.totalorder %s143, %s146
      %p155 = scmp.eq.s32.totalorder %s18, 3
      %p156 = por %p154, %p155
      %p157 = scmp.ne.s32.totalorder %s146, %s147
      %p158 = scmp.eq.s32.totalorder %s18, 0
      %p159 = por %p157, %p158
      %p160 = scmp.ne.s32.totalorder %s146, %s147
      %p161 = scmp.eq.s32.totalorder %s19, 3
      %p162 = por %p160, %p161
      %p164 = scmp.ne.s32.totalorder %s147, %s163
      %p165 = scmp.eq.s32.totalorder %s19, 0
      %p166 = por %p164, %p165
      %p167 = scmp.le.s32.totalorder 1, %s13
      %p168 = scmp.lt.s32.totalorder %s13, 5
      %p169 = pnand %p167, %p168
      %p170 = pneg %p169
      // Predicated region
      $region9: #{tpu_custom_call.1} parent=5 // pred_check
        _
      $region10: #{tpu_custom_call.1} parent=5 // pred_check_branch
        %172 = sbr.rel (%p169) target = $region12
      $region11: #{tpu_custom_call.1} parent=5 // pred_region
        %s173 = ssub.s32 %s13, 1
        // Predicated region
        $region13: #{tpu_custom_call.1} parent=11 // pred_check
          %p174 = pneg %p60
        $region14: #{tpu_custom_call.1} parent=11 // pred_check_branch
          %176 = sbr.rel (%p174) target = $region16
        $region15: #{tpu_custom_call.1} parent=11 // pred_region
          _
        $region16: #{tpu_custom_call.1} parent=11 // pred_fallthru
          _
        // Predicated region
        $region17: #{tpu_custom_call.1} parent=11 // pred_check
          %p177 = pneg %p81
        $region18: #{tpu_custom_call.1} parent=11 // pred_check_branch
          %179 = sbr.rel (%p177) target = $region20
        $region19: #{tpu_custom_call.1} parent=11 // pred_region
          _
        $region20: #{tpu_custom_call.1} parent=11 // pred_fallthru
          _
      $region12: #{tpu_custom_call.1} parent=5 // pred_fallthru
        _
      %p180 = scmp.lt.s32.totalorder %s13, 4
      // Predicated region
      $region21: #{tpu_custom_call.1} parent=5 // pred_check
        %p181 = pneg %p180
      $region22: #{tpu_custom_call.1} parent=5 // pred_check_branch
        %183 = sbr.rel (%p181) target = $region24
      $region23: #{tpu_custom_call.1} parent=5 // pred_region
        // Predicated region
        $region25: #{tpu_custom_call.1} parent=23 // pred_check
          %p184 = pneg %p33
        $region26: #{tpu_custom_call.1} parent=23 // pred_check_branch
          %186 = sbr.rel (%p184) target = $region28
        $region27: #{tpu_custom_call.1} parent=23 // pred_region
          %s187 = smul.u32 32, %s13
          %s188 = ssub.s32 125, %s187
          %p189 = scmp.lt.s32.totalorder %s188, 32
          %s190 = scalar_select %p189, %s188, 32
          %s191 = smul.u32 4, %s190
          %p192 = scmp.lt.s32.totalorder %s187, 124
          %s193 = scalar_select %p192, %s187, 124
          %s194 = smul.addr %s193, 4
          %s195 = scalar_lea.vmem %s0, %s194
          %s196 = smul.u32 32, %s13
          %s197 = ssub.s32 125, %s196
          %p198 = scmp.lt.s32.totalorder %s197, 32
          %s199 = scalar_select %p198, %s197, 32
          %s200 = smul.u32 4, %s199
        $region28: #{tpu_custom_call.1} parent=23 // pred_fallthru
          _
        // Predicated region
        $region29: #{tpu_custom_call.1} parent=23 // pred_check
          %p201 = pneg %p101
        $region30: #{tpu_custom_call.1} parent=23 // pred_check_branch
          %203 = sbr.rel (%p201) target = $region32
        $region31: #{tpu_custom_call.1} parent=23 // pred_region
          %s204 = smul.u32 32, %s13
          %s205 = ssub.s32 125, %s204
          %p206 = scmp.lt.s32.totalorder %s205, 32
          %s207 = scalar_select %p206, %s205, 32
          %s208 = smul.u32 8, %s207
          %p209 = scmp.lt.s32.totalorder %s204, 124
          %s210 = scalar_select %p209, %s204, 124
          %s211 = smul.addr %s210, 8
          %s212 = scalar_lea.vmem %s3, %s211
          %s213 = smul.u32 32, %s13
          %s214 = ssub.s32 125, %s213
          %p215 = scmp.lt.s32.totalorder %s214, 32
          %s216 = scalar_select %p215, %s214, 32
          %s217 = smul.u32 8, %s216
        $region32: #{tpu_custom_call.1} parent=23 // pred_fallthru
          _
      $region24: #{tpu_custom_call.1} parent=5 // pred_fallthru
        _
      %p218 = scmp.le.s32.totalorder 1, %s13
      %p219 = scmp.lt.s32.totalorder %s13, 5
      %p220 = pnand %p218, %p219
      %p221 = pneg %p220
      // Predicated region
      $region33: #{tpu_custom_call.1} parent=5 // pred_check
        _
      $region34: #{tpu_custom_call.1} parent=5 // pred_check_branch
        %223 = sbr.rel (%p220) target = $region36
      $region35: #{tpu_custom_call.1} parent=5 // pred_region
        %s224 = ssub.s32 %s13, 1
        %s225 = smul.u32 32, %s18
        %s226 = ssub.s32 125, %s225
        %p227 = scmp.lt.s32.totalorder %s226, 32
        %s228 = scalar_select %p227, %s226, 32
        %s229 = smul.u32 4, %s228
        %p230 = scmp.lt.s32.totalorder %s225, 124
        %s231 = scalar_select %p230, %s225, 124
        %s232 = smul.addr %s231, 4
        %s233 = scalar_lea.vmem %s0, %s232
        %p234 = pneg %p39
        %p235 = pneg %p36
        %p236 = pneg %p60
        %p237 = pneg %p57
        %p238 = pneg %p81
        %p239 = pneg %p78
        %s240 = smul.u32 32, %s18
        %s241 = ssub.s32 125, %s240
        %p242 = scmp.lt.s32.totalorder %s241, 32
        %s243 = scalar_select %p242, %s241, 32
        %s244 = smul.u32 8, %s243
        %p245 = scmp.lt.s32.totalorder %s240, 124
        %s246 = scalar_select %p245, %s240, 124
        %s247 = smul.addr %s246, 8
        %s248 = scalar_lea.vmem %s3, %s247
        %p249 = pneg %p107
        %p250 = pneg %p104
        %p251 = pneg %p133
        %p252 = pneg %p130
        %s253 = sand.u32 %s120, 1
        %s254 = sand.u32 %s120, 1
        %s255 = smul.addr %s254, 256
        %s256 = scalar_lea.vmem [#allocation3], %s255
        %p257 = pneg %p159
        %p258 = pneg %p156
        %p259 = scmp.lt.s32.totalorder %s18, 3
        %s260 = scalar_select %p259, %s18, 3
        %s261 = scalar_lea.vmem %s5, %s260
        %s262 = smul.u32 32, %s18
        %s263 = ssub.s32 125, %s262
        %p264 = scmp.lt.s32.totalorder %s263, 32
        %s265 = scalar_select %p264, %s263, 32
        %s266 = smul.u32 4, %s265
        %p267 = scmp.lt.s32.totalorder %s262, 124
        %s268 = scalar_select %p267, %s262, 124
        %s269 = smul.addr %s268, 4
        %s270 = scalar_lea.vmem %s0, %s269
        %s271 = smul.u32 32, %s18
        %s272 = ssub.s32 125, %s271
        %p273 = scmp.lt.s32.totalorder %s272, 32
        %s274 = scalar_select %p273, %s272, 32
        %s275 = smul.u32 4, %s274
        %s276 = smul.u32 32, %s18
        %s277 = ssub.s32 125, %s276
        %p278 = scmp.lt.s32.totalorder %s277, 32
        %s279 = scalar_select %p278, %s277, 32
        %s280 = smul.u32 8, %s279
        %p281 = scmp.lt.s32.totalorder %s276, 124
        %s282 = scalar_select %p281, %s276, 124
        %s283 = smul.addr %s282, 8
        %s284 = scalar_lea.vmem %s3, %s283
        %s285 = smul.u32 32, %s18
        %s286 = ssub.s32 125, %s285
        %p287 = scmp.lt.s32.totalorder %s286, 32
        %s288 = scalar_select %p287, %s286, 32
        %s289 = smul.u32 8, %s288
        %s290 = smul.u32 32, %s18
        %s291 = ssub.s32 125, %s290
        %p292 = scmp.lt.s32.totalorder %s291, 32
        %s293 = scalar_select %p292, %s291, 32
        %s294 = smul.u32 8, %s293
        %p295 = scmp.lt.s32.totalorder %s18, 3
        %s296 = scalar_select %p295, %s18, 3
        %s297 = scalar_lea.vmem %s5, %s296
        %v298 = vld [vmem:[%s270] sm:$0xf]
        %v299 = vld [vmem:[%s270 + $0x4] sm:$0xf]
        %v300 = vld [vmem:[%s270 + $0x8] sm:$0xf]
        %v301 = vld [vmem:[%s270 + $0xc] sm:$0xf]
        %v302 = vld [vmem:[%s270 + $0x10] sm:$0xf]
        %v303 = vld [vmem:[%s270 + $0x14] sm:$0xf]
        %v304 = vld [vmem:[%s270 + $0x18] sm:$0xf]
        %v305 = vld [vmem:[%s270 + $0x1c] sm:$0xf]
        %v306 = vld [vmem:[%s270 + $0x20] sm:$0xf]
        %v307 = vld [vmem:[%s270 + $0x24] sm:$0xf]
        %v308 = vld [vmem:[%s270 + $0x28] sm:$0xf]
        %v309 = vld [vmem:[%s270 + $0x2c] sm:$0xf]
        %v310 = vld [vmem:[%s270 + $0x30] sm:$0xf]
        %v311 = vld [vmem:[%s270 + $0x34] sm:$0xf]
        %v312 = vld [vmem:[%s270 + $0x38] sm:$0xf]
        %v313 = vld [vmem:[%s270 + $0x3c] sm:$0xf]
        %v314 = vld [vmem:[%s270 + $0x40] sm:$0xf]
        %v315 = vld [vmem:[%s270 + $0x44] sm:$0xf]
        %v316 = vld [vmem:[%s270 + $0x48] sm:$0xf]
        %v317 = vld [vmem:[%s270 + $0x4c] sm:$0xf]
        %v318 = vld [vmem:[%s270 + $0x50] sm:$0xf]
        %v319 = vld [vmem:[%s270 + $0x54] sm:$0xf]
        %v320 = vld [vmem:[%s270 + $0x58] sm:$0xf]
        %v321 = vld [vmem:[%s270 + $0x5c] sm:$0xf]
        %v322 = vld [vmem:[%s270 + $0x60] sm:$0xf]
        %v323 = vld [vmem:[%s270 + $0x64] sm:$0xf]
        %v324 = vld [vmem:[%s270 + $0x68] sm:$0xf]
        %v325 = vld [vmem:[%s270 + $0x6c] sm:$0xf]
        %v326 = vld [vmem:[%s270 + $0x70] sm:$0xf]
        %v327 = vld [vmem:[%s270 + $0x74] sm:$0xf]
        %v328 = vld [vmem:[%s270 + $0x78] sm:$0xf]
        %v329 = vld [vmem:[%s270 + $0x7c] sm:$0xf]
        %v330 = vunpack.c.l.bf16 %v298
        %v331 = vunpack.c.l.bf16 %v299
        %v332 = vunpack.c.l.bf16 %v300
        %v333 = vunpack.c.l.bf16 %v301
        %v334 = vunpack.c.l.bf16 %v302
        %v335 = vunpack.c.l.bf16 %v303
        %v336 = vunpack.c.l.bf16 %v304
        %v337 = vunpack.c.l.bf16 %v305
        %v338 = vunpack.c.l.bf16 %v306
        %v339 = vunpack.c.l.bf16 %v307
        %v340 = vunpack.c.l.bf16 %v308
        %v341 = vunpack.c.l.bf16 %v309
        %v342 = vunpack.c.l.bf16 %v310
        %v343 = vunpack.c.l.bf16 %v311
        %v344 = vunpack.c.l.bf16 %v312
        %v345 = vunpack.c.l.bf16 %v313
        %v346 = vunpack.c.l.bf16 %v314
        %v347 = vunpack.c.l.bf16 %v315
        %v348 = vunpack.c.l.bf16 %v316
        %v349 = vunpack.c.l.bf16 %v317
        %v350 = vunpack.c.l.bf16 %v318
        %v351 = vunpack.c.l.bf16 %v319
        %v352 = vunpack.c.l.bf16 %v320
        %v353 = vunpack.c.l.bf16 %v321
        %v354 = vunpack.c.l.bf16 %v322
        %v355 = vunpack.c.l.bf16 %v323
        %v356 = vunpack.c.l.bf16 %v324
        %v357 = vunpack.c.l.bf16 %v325
        %v358 = vunpack.c.l.bf16 %v326
        %v359 = vunpack.c.l.bf16 %v327
        %v360 = vunpack.c.l.bf16 %v328
        %v361 = vunpack.c.l.bf16 %v329
        %v362 = vld [vmem:[%s1] sm:$0x1]
        %v364 = vperm.slane %v362, 0
        %v366 = vmul.f32 %v330, %v364
        %v367 = vmul.f32 %v331, %v364
        %v368 = vmul.f32 %v332, %v364
        %v369 = vmul.f32 %v333, %v364
        %v370 = vmul.f32 %v334, %v364
        %v371 = vmul.f32 %v335, %v364
        %v372 = vmul.f32 %v336, %v364
        %v373 = vmul.f32 %v337, %v364
        %v374 = vmul.f32 %v338, %v364
        %v375 = vmul.f32 %v339, %v364
        %v376 = vmul.f32 %v340, %v364
        %v377 = vmul.f32 %v341, %v364
        %v378 = vmul.f32 %v342, %v364
        %v379 = vmul.f32 %v343, %v364
        %v380 = vmul.f32 %v344, %v364
        %v381 = vmul.f32 %v345, %v364
        %v382 = vmul.f32 %v346, %v364
        %v383 = vmul.f32 %v347, %v364
        %v384 = vmul.f32 %v348, %v364
        %v385 = vmul.f32 %v349, %v364
        %v386 = vmul.f32 %v350, %v364
        %v387 = vmul.f32 %v351, %v364
        %v388 = vmul.f32 %v352, %v364
        %v389 = vmul.f32 %v353, %v364
        %v390 = vmul.f32 %v354, %v364
        %v391 = vmul.f32 %v355, %v364
        %v392 = vmul.f32 %v356, %v364
        %v393 = vmul.f32 %v357, %v364
        %v394 = vmul.f32 %v358, %v364
        %v395 = vmul.f32 %v359, %v364
        %v396 = vmul.f32 %v360, %v364
        %v397 = vmul.f32 %v361, %v364
        %vm398 = vcmask 261120
        %v399 = vsel %vm398, %v366, 0.0
        %400 = vadd.xlane.f32.xlu0 %v399
        %v401 = vpop.xlane.xlu0 %400
        %v402 = vsel %vm398, %v367, 0.0
        %403 = vadd.xlane.f32.xlu0 %v402
        %v404 = vpop.xlane.xlu0 %403
        %v405 = vsel %vm398, %v368, 0.0
        %406 = vadd.xlane.f32.xlu0 %v405
        %v407 = vpop.xlane.xlu0 %406
        %v408 = vsel %vm398, %v369, 0.0
        %409 = vadd.xlane.f32.xlu0 %v408
        %v410 = vpop.xlane.xlu0 %409
        %v411 = vsel %vm398, %v370, 0.0
        %412 = vadd.xlane.f32.xlu0 %v411
        %v413 = vpop.xlane.xlu0 %412
        %v414 = vsel %vm398, %v371, 0.0
        %415 = vadd.xlane.f32.xlu0 %v414
        %v416 = vpop.xlane.xlu0 %415
        %v417 = vsel %vm398, %v372, 0.0
        %418 = vadd.xlane.f32.xlu0 %v417
        %v419 = vpop.xlane.xlu0 %418
        %v420 = vsel %vm398, %v373, 0.0
        %421 = vadd.xlane.f32.xlu0 %v420
        %v422 = vpop.xlane.xlu0 %421
        %v423 = vsel %vm398, %v374, 0.0
        %424 = vadd.xlane.f32.xlu0 %v423
        %v425 = vpop.xlane.xlu0 %424
        %v426 = vsel %vm398, %v375, 0.0
        %427 = vadd.xlane.f32.xlu0 %v426
        %v428 = vpop.xlane.xlu0 %427
        %v429 = vsel %vm398, %v376, 0.0
        %430 = vadd.xlane.f32.xlu0 %v429
        %v431 = vpop.xlane.xlu0 %430
        %v432 = vsel %vm398, %v377, 0.0
        %433 = vadd.xlane.f32.xlu0 %v432
        %v434 = vpop.xlane.xlu0 %433
        %v435 = vsel %vm398, %v378, 0.0
        %436 = vadd.xlane.f32.xlu0 %v435
        %v437 = vpop.xlane.xlu0 %436
        %v438 = vsel %vm398, %v379, 0.0
        %439 = vadd.xlane.f32.xlu0 %v438
        %v440 = vpop.xlane.xlu0 %439
        %v441 = vsel %vm398, %v380, 0.0
        %442 = vadd.xlane.f32.xlu0 %v441
        %v443 = vpop.xlane.xlu0 %442
        %v444 = vsel %vm398, %v381, 0.0
        %445 = vadd.xlane.f32.xlu0 %v444
        %v446 = vpop.xlane.xlu0 %445
        %v447 = vsel %vm398, %v382, 0.0
        %448 = vadd.xlane.f32.xlu0 %v447
        %v449 = vpop.xlane.xlu0 %448
        %v450 = vsel %vm398, %v383, 0.0
        %451 = vadd.xlane.f32.xlu0 %v450
        %v452 = vpop.xlane.xlu0 %451
        %v453 = vsel %vm398, %v384, 0.0
        %454 = vadd.xlane.f32.xlu0 %v453
        %v455 = vpop.xlane.xlu0 %454
        %v456 = vsel %vm398, %v385, 0.0
        %457 = vadd.xlane.f32.xlu0 %v456
        %v458 = vpop.xlane.xlu0 %457
        %v459 = vsel %vm398, %v386, 0.0
        %460 = vadd.xlane.f32.xlu0 %v459
        %v461 = vpop.xlane.xlu0 %460
        %v462 = vsel %vm398, %v387, 0.0
        %463 = vadd.xlane.f32.xlu0 %v462
        %v464 = vpop.xlane.xlu0 %463
        %v465 = vsel %vm398, %v388, 0.0
        %466 = vadd.xlane.f32.xlu0 %v465
        %v467 = vpop.xlane.xlu0 %466
        %v468 = vsel %vm398, %v389, 0.0
        %469 = vadd.xlane.f32.xlu0 %v468
        %v470 = vpop.xlane.xlu0 %469
        %v471 = vsel %vm398, %v390, 0.0
        %472 = vadd.xlane.f32.xlu0 %v471
        %v473 = vpop.xlane.xlu0 %472
        %v474 = vsel %vm398, %v391, 0.0
        %475 = vadd.xlane.f32.xlu0 %v474
        %v476 = vpop.xlane.xlu0 %475
        %v477 = vsel %vm398, %v392, 0.0
        %478 = vadd.xlane.f32.xlu0 %v477
        %v479 = vpop.xlane.xlu0 %478
        %v480 = vsel %vm398, %v393, 0.0
        %481 = vadd.xlane.f32.xlu0 %v480
        %v482 = vpop.xlane.xlu0 %481
        %v483 = vsel %vm398, %v394, 0.0
        %484 = vadd.xlane.f32.xlu0 %v483
        %v485 = vpop.xlane.xlu0 %484
        %v486 = vsel %vm398, %v395, 0.0
        %487 = vadd.xlane.f32.xlu0 %v486
        %v488 = vpop.xlane.xlu0 %487
        %v489 = vsel %vm398, %v396, 0.0
        %490 = vadd.xlane.f32.xlu0 %v489
        %v491 = vpop.xlane.xlu0 %490
        %v492 = vsel %vm398, %v397, 0.0
        %493 = vadd.xlane.f32.xlu0 %v492
        %v494 = vpop.xlane.xlu0 %493
        %s495 = sld [smem:[#allocation2]]
        %v496 = vstv %s495
        %v497 = vadd.f32 %v401, %v496
        %v498 = vadd.f32 %v404, %v496
        %v499 = vadd.f32 %v407, %v496
        %v500 = vadd.f32 %v410, %v496
        %v501 = vadd.f32 %v413, %v496
        %v502 = vadd.f32 %v416, %v496
        %v503 = vadd.f32 %v419, %v496
        %v504 = vadd.f32 %v422, %v496
        %v505 = vadd.f32 %v425, %v496
        %v506 = vadd.f32 %v428, %v496
        %v507 = vadd.f32 %v431, %v496
        %v508 = vadd.f32 %v434, %v496
        %v509 = vadd.f32 %v437, %v496
        %v510 = vadd.f32 %v440, %v496
        %v511 = vadd.f32 %v443, %v496
        %v512 = vadd.f32 %v446, %v496
        %v513 = vadd.f32 %v449, %v496
        %v514 = vadd.f32 %v452, %v496
        %v515 = vadd.f32 %v455, %v496
        %v516 = vadd.f32 %v458, %v496
        %v517 = vadd.f32 %v461, %v496
        %v518 = vadd.f32 %v464, %v496
        %v519 = vadd.f32 %v467, %v496
        %v520 = vadd.f32 %v470, %v496
        %v521 = vadd.f32 %v473, %v496
        %v522 = vadd.f32 %v476, %v496
        %v523 = vadd.f32 %v479, %v496
        %v524 = vadd.f32 %v482, %v496
        %v525 = vadd.f32 %v485, %v496
        %v526 = vadd.f32 %v488, %v496
        %v527 = vadd.f32 %v491, %v496
        %v528 = vadd.f32 %v494, %v496
        %v529 = vand.u32 2147483647, %v497
        %v530 = vand.u32 2147483647, %v498
        %v531 = vand.u32 2147483647, %v499
        %v532 = vand.u32 2147483647, %v500
        %v533 = vand.u32 2147483647, %v501
        %v534 = vand.u32 2147483647, %v502
        %v535 = vand.u32 2147483647, %v503
        %v536 = vand.u32 2147483647, %v504
        %v537 = vand.u32 2147483647, %v505
        %v538 = vand.u32 2147483647, %v506
        %v539 = vand.u32 2147483647, %v507
        %v540 = vand.u32 2147483647, %v508
        %v541 = vand.u32 2147483647, %v509
        %v542 = vand.u32 2147483647, %v510
        %v543 = vand.u32 2147483647, %v511
        %v544 = vand.u32 2147483647, %v512
        %v545 = vand.u32 2147483647, %v513
        %v546 = vand.u32 2147483647, %v514
        %v547 = vand.u32 2147483647, %v515
        %v548 = vand.u32 2147483647, %v516
        %v549 = vand.u32 2147483647, %v517
        %v550 = vand.u32 2147483647, %v518
        %v551 = vand.u32 2147483647, %v519
        %v552 = vand.u32 2147483647, %v520
        %v553 = vand.u32 2147483647, %v521
        %v554 = vand.u32 2147483647, %v522
        %v555 = vand.u32 2147483647, %v523
        %v556 = vand.u32 2147483647, %v524
        %v557 = vand.u32 2147483647, %v525
        %v558 = vand.u32 2147483647, %v526
        %v559 = vand.u32 2147483647, %v527
        %v560 = vand.u32 2147483647, %v528
        %v561 = vsub.f32 0.0, %v529
        %v562 = vsub.f32 0.0, %v530
        %v563 = vsub.f32 0.0, %v531
        %v564 = vsub.f32 0.0, %v532
        %v565 = vsub.f32 0.0, %v533
        %v566 = vsub.f32 0.0, %v534
        %v567 = vsub.f32 0.0, %v535
        %v568 = vsub.f32 0.0, %v536
        %v569 = vsub.f32 0.0, %v537
        %v570 = vsub.f32 0.0, %v538
        %v571 = vsub.f32 0.0, %v539
        %v572 = vsub.f32 0.0, %v540
        %v573 = vsub.f32 0.0, %v541
        %v574 = vsub.f32 0.0, %v542
        %v575 = vsub.f32 0.0, %v543
        %v576 = vsub.f32 0.0, %v544
        %v577 = vsub.f32 0.0, %v545
        %v578 = vsub.f32 0.0, %v546
        %v579 = vsub.f32 0.0, %v547
        %v580 = vsub.f32 0.0, %v548
        %v581 = vsub.f32 0.0, %v549
        %v582 = vsub.f32 0.0, %v550
        %v583 = vsub.f32 0.0, %v551
        %v584 = vsub.f32 0.0, %v552
        %v585 = vsub.f32 0.0, %v553
        %v586 = vsub.f32 0.0, %v554
        %v587 = vsub.f32 0.0, %v555
        %v588 = vsub.f32 0.0, %v556
        %v589 = vsub.f32 0.0, %v557
        %v590 = vsub.f32 0.0, %v558
        %v591 = vsub.f32 0.0, %v559
        %v592 = vsub.f32 0.0, %v560
        %v593 = vmul.f32 %v561, 1.442695
        %v594 = vpow.pop %v593
        %v595 = vmul.f32 %v562, 1.442695
        %v596 = vpow.pop %v595
        %v597 = vmul.f32 %v563, 1.442695
        %v598 = vpow.pop %v597
        %v599 = vmul.f32 %v564, 1.442695
        %v600 = vpow.pop %v599
        %v601 = vmul.f32 %v565, 1.442695
        %v602 = vpow.pop %v601
        %v603 = vmul.f32 %v566, 1.442695
        %v604 = vpow.pop %v603
        %v605 = vmul.f32 %v567, 1.442695
        %v606 = vpow.pop %v605
        %v607 = vmul.f32 %v568, 1.442695
        %v608 = vpow.pop %v607
        %v609 = vmul.f32 %v569, 1.442695
        %v610 = vpow.pop %v609
        %v611 = vmul.f32 %v570, 1.442695
        %v612 = vpow.pop %v611
        %v613 = vmul.f32 %v571, 1.442695
        %v614 = vpow.pop %v613
        %v615 = vmul.f32 %v572, 1.442695
        %v616 = vpow.pop %v615
        %v617 = vmul.f32 %v573, 1.442695
        %v618 = vpow.pop %v617
        %v619 = vmul.f32 %v574, 1.442695
        %v620 = vpow.pop %v619
        %v621 = vmul.f32 %v575, 1.442695
        %v622 = vpow.pop %v621
        %v623 = vmul.f32 %v576, 1.442695
        %v624 = vpow.pop %v623
        %v625 = vmul.f32 %v577, 1.442695
        %v626 = vpow.pop %v625
        %v627 = vmul.f32 %v578, 1.442695
        %v628 = vpow.pop %v627
        %v629 = vmul.f32 %v579, 1.442695
        %v630 = vpow.pop %v629
        %v631 = vmul.f32 %v580, 1.442695
        %v632 = vpow.pop %v631
        %v633 = vmul.f32 %v581, 1.442695
        %v634 = vpow.pop %v633
        %v635 = vmul.f32 %v582, 1.442695
        %v636 = vpow.pop %v635
        %v637 = vmul.f32 %v583, 1.442695
        %v638 = vpow.pop %v637
        %v639 = vmul.f32 %v584, 1.442695
        %v640 = vpow.pop %v639
        %v641 = vmul.f32 %v585, 1.442695
        %v642 = vpow.pop %v641
        %v643 = vmul.f32 %v586, 1.442695
        %v644 = vpow.pop %v643
        %v645 = vmul.f32 %v587, 1.442695
        %v646 = vpow.pop %v645
        %v647 = vmul.f32 %v588, 1.442695
        %v648 = vpow.pop %v647
        %v649 = vmul.f32 %v589, 1.442695
        %v650 = vpow.pop %v649
        %v651 = vmul.f32 %v590, 1.442695
        %v652 = vpow.pop %v651
        %v653 = vmul.f32 %v591, 1.442695
        %v654 = vpow.pop %v653
        %v655 = vmul.f32 %v592, 1.442695
        %v656 = vpow.pop %v655
        %v657 = vadd.f32 %v594, 1.0
        %v658 = vadd.f32 %v596, 1.0
        %v659 = vadd.f32 %v598, 1.0
        %v660 = vadd.f32 %v600, 1.0
        %v661 = vadd.f32 %v602, 1.0
        %v662 = vadd.f32 %v604, 1.0
        %v663 = vadd.f32 %v606, 1.0
        %v664 = vadd.f32 %v608, 1.0
        %v665 = vadd.f32 %v610, 1.0
        %v666 = vadd.f32 %v612, 1.0
        %v667 = vadd.f32 %v614, 1.0
        %v668 = vadd.f32 %v616, 1.0
        %v669 = vadd.f32 %v618, 1.0
        %v670 = vadd.f32 %v620, 1.0
        %v671 = vadd.f32 %v622, 1.0
        %v672 = vadd.f32 %v624, 1.0
        %v673 = vadd.f32 %v626, 1.0
        %v674 = vadd.f32 %v628, 1.0
        %v675 = vadd.f32 %v630, 1.0
        %v676 = vadd.f32 %v632, 1.0
        %v677 = vadd.f32 %v634, 1.0
        %v678 = vadd.f32 %v636, 1.0
        %v679 = vadd.f32 %v638, 1.0
        %v680 = vadd.f32 %v640, 1.0
        %v681 = vadd.f32 %v642, 1.0
        %v682 = vadd.f32 %v644, 1.0
        %v683 = vadd.f32 %v646, 1.0
        %v684 = vadd.f32 %v648, 1.0
        %v685 = vadd.f32 %v650, 1.0
        %v686 = vadd.f32 %v652, 1.0
        %v687 = vadd.f32 %v654, 1.0
        %v688 = vadd.f32 %v656, 1.0
        %v689 = vrcp.pop %v657
        %v690 = vmul.f32 %v657, %v689
        %v691 = vsub.f32 1.0, %v690
        %v692 = vmul.f32 %v689, %v691
        %v693 = vadd.f32 %v689, %v692
        %vm694 = vweird.f32 %v657
        %vm695 = vweird.f32 %v689
        %vm696 = vmor %vm694, %vm695
        %v697 = vsel %vm696, %v689, %v693
        %v698 = vand.u32 2147483647, %v657
        %vm699 = vcmp.eq.f32.partialorder %v698, 8.507059e+37
        %v700 = vand.u32 %v657, 2147483648
        %v701 = vor.u32 1.1754944e-38, %v700
        %v702 = vsel %vm699, %v701, %v697
        %v703 = vrcp.pop %v658
        %v704 = vmul.f32 %v658, %v703
        %v705 = vsub.f32 1.0, %v704
        %v706 = vmul.f32 %v703, %v705
        %v707 = vadd.f32 %v703, %v706
        %vm708 = vweird.f32 %v658
        %vm709 = vweird.f32 %v703
        %vm710 = vmor %vm708, %vm709
        %v711 = vsel %vm710, %v703, %v707
        %v712 = vand.u32 2147483647, %v658
        %vm713 = vcmp.eq.f32.partialorder %v712, 8.507059e+37
        %v714 = vand.u32 %v658, 2147483648
        %v715 = vor.u32 1.1754944e-38, %v714
        %v716 = vsel %vm713, %v715, %v711
        %v717 = vrcp.pop %v659
        %v718 = vmul.f32 %v659, %v717
        %v719 = vsub.f32 1.0, %v718
        %v720 = vmul.f32 %v717, %v719
        %v721 = vadd.f32 %v717, %v720
        %vm722 = vweird.f32 %v659
        %vm723 = vweird.f32 %v717
        %vm724 = vmor %vm722, %vm723
        %v725 = vsel %vm724, %v717, %v721
        %v726 = vand.u32 2147483647, %v659
        %vm727 = vcmp.eq.f32.partialorder %v726, 8.507059e+37
        %v728 = vand.u32 %v659, 2147483648
        %v729 = vor.u32 1.1754944e-38, %v728
        %v730 = vsel %vm727, %v729, %v725
        %v731 = vrcp.pop %v660
        %v732 = vmul.f32 %v660, %v731
        %v733 = vsub.f32 1.0, %v732
        %v734 = vmul.f32 %v731, %v733
        %v735 = vadd.f32 %v731, %v734
        %vm736 = vweird.f32 %v660
        %vm737 = vweird.f32 %v731
        %vm738 = vmor %vm736, %vm737
        %v739 = vsel %vm738, %v731, %v735
        %v740 = vand.u32 2147483647, %v660
        %vm741 = vcmp.eq.f32.partialorder %v740, 8.507059e+37
        %v742 = vand.u32 %v660, 2147483648
        %v743 = vor.u32 1.1754944e-38, %v742
        %v744 = vsel %vm741, %v743, %v739
        %v745 = vrcp.pop %v661
        %v746 = vmul.f32 %v661, %v745
        %v747 = vsub.f32 1.0, %v746
        %v748 = vmul.f32 %v745, %v747
        %v749 = vadd.f32 %v745, %v748
        %vm750 = vweird.f32 %v661
        %vm751 = vweird.f32 %v745
        %vm752 = vmor %vm750, %vm751
        %v753 = vsel %vm752, %v745, %v749
        %v754 = vand.u32 2147483647, %v661
        %vm755 = vcmp.eq.f32.partialorder %v754, 8.507059e+37
        %v756 = vand.u32 %v661, 2147483648
        %v757 = vor.u32 1.1754944e-38, %v756
        %v758 = vsel %vm755, %v757, %v753
        %v759 = vrcp.pop %v662
        %v760 = vmul.f32 %v662, %v759
        %v761 = vsub.f32 1.0, %v760
        %v762 = vmul.f32 %v759, %v761
        %v763 = vadd.f32 %v759, %v762
        %vm764 = vweird.f32 %v662
        %vm765 = vweird.f32 %v759
        %vm766 = vmor %vm764, %vm765
        %v767 = vsel %vm766, %v759, %v763
        %v768 = vand.u32 2147483647, %v662
        %vm769 = vcmp.eq.f32.partialorder %v768, 8.507059e+37
        %v770 = vand.u32 %v662, 2147483648
        %v771 = vor.u32 1.1754944e-38, %v770
        %v772 = vsel %vm769, %v771, %v767
        %v773 = vrcp.pop %v663
        %v774 = vmul.f32 %v663, %v773
        %v775 = vsub.f32 1.0, %v774
        %v776 = vmul.f32 %v773, %v775
        %v777 = vadd.f32 %v773, %v776
        %vm778 = vweird.f32 %v663
        %vm779 = vweird.f32 %v773
        %vm780 = vmor %vm778, %vm779
        %v781 = vsel %vm780, %v773, %v777
        %v782 = vand.u32 2147483647, %v663
        %vm783 = vcmp.eq.f32.partialorder %v782, 8.507059e+37
        %v784 = vand.u32 %v663, 2147483648
        %v785 = vor.u32 1.1754944e-38, %v784
        %v786 = vsel %vm783, %v785, %v781
        %v787 = vrcp.pop %v664
        %v788 = vmul.f32 %v664, %v787
        %v789 = vsub.f32 1.0, %v788
        %v790 = vmul.f32 %v787, %v789
        %v791 = vadd.f32 %v787, %v790
        %vm792 = vweird.f32 %v664
        %vm793 = vweird.f32 %v787
        %vm794 = vmor %vm792, %vm793
        %v795 = vsel %vm794, %v787, %v791
        %v796 = vand.u32 2147483647, %v664
        %vm797 = vcmp.eq.f32.partialorder %v796, 8.507059e+37
        %v798 = vand.u32 %v664, 2147483648
        %v799 = vor.u32 1.1754944e-38, %v798
        %v800 = vsel %vm797, %v799, %v795
        %v801 = vrcp.pop %v665
        %v802 = vmul.f32 %v665, %v801
        %v803 = vsub.f32 1.0, %v802
        %v804 = vmul.f32 %v801, %v803
        %v805 = vadd.f32 %v801, %v804
        %vm806 = vweird.f32 %v665
        %vm807 = vweird.f32 %v801
        %vm808 = vmor %vm806, %vm807
        %v809 = vsel %vm808, %v801, %v805
        %v810 = vand.u32 2147483647, %v665
        %vm811 = vcmp.eq.f32.partialorder %v810, 8.507059e+37
        %v812 = vand.u32 %v665, 2147483648
        %v813 = vor.u32 1.1754944e-38, %v812
        %v814 = vsel %vm811, %v813, %v809
        %v815 = vrcp.pop %v666
        %v816 = vmul.f32 %v666, %v815
        %v817 = vsub.f32 1.0, %v816
        %v818 = vmul.f32 %v815, %v817
        %v819 = vadd.f32 %v815, %v818
        %vm820 = vweird.f32 %v666
        %vm821 = vweird.f32 %v815
        %vm822 = vmor %vm820, %vm821
        %v823 = vsel %vm822, %v815, %v819
        %v824 = vand.u32 2147483647, %v666
        %vm825 = vcmp.eq.f32.partialorder %v824, 8.507059e+37
        %v826 = vand.u32 %v666, 2147483648
        %v827 = vor.u32 1.1754944e-38, %v826
        %v828 = vsel %vm825, %v827, %v823
        %v829 = vrcp.pop %v667
        %v830 = vmul.f32 %v667, %v829
        %v831 = vsub.f32 1.0, %v830
        %v832 = vmul.f32 %v829, %v831
        %v833 = vadd.f32 %v829, %v832
        %vm834 = vweird.f32 %v667
        %vm835 = vweird.f32 %v829
        %vm836 = vmor %vm834, %vm835
        %v837 = vsel %vm836, %v829, %v833
        %v838 = vand.u32 2147483647, %v667
        %vm839 = vcmp.eq.f32.partialorder %v838, 8.507059e+37
        %v840 = vand.u32 %v667, 2147483648
        %v841 = vor.u32 1.1754944e-38, %v840
        %v842 = vsel %vm839, %v841, %v837
        %v843 = vrcp.pop %v668
        %v844 = vmul.f32 %v668, %v843
        %v845 = vsub.f32 1.0, %v844
        %v846 = vmul.f32 %v843, %v845
        %v847 = vadd.f32 %v843, %v846
        %vm848 = vweird.f32 %v668
        %vm849 = vweird.f32 %v843
        %vm850 = vmor %vm848, %vm849
        %v851 = vsel %vm850, %v843, %v847
        %v852 = vand.u32 2147483647, %v668
        %vm853 = vcmp.eq.f32.partialorder %v852, 8.507059e+37
        %v854 = vand.u32 %v668, 2147483648
        %v855 = vor.u32 1.1754944e-38, %v854
        %v856 = vsel %vm853, %v855, %v851
        %v857 = vrcp.pop %v669
        %v858 = vmul.f32 %v669, %v857
        %v859 = vsub.f32 1.0, %v858
        %v860 = vmul.f32 %v857, %v859
        %v861 = vadd.f32 %v857, %v860
        %vm862 = vweird.f32 %v669
        %vm863 = vweird.f32 %v857
        %vm864 = vmor %vm862, %vm863
        %v865 = vsel %vm864, %v857, %v861
        %v866 = vand.u32 2147483647, %v669
        %vm867 = vcmp.eq.f32.partialorder %v866, 8.507059e+37
        %v868 = vand.u32 %v669, 2147483648
        %v869 = vor.u32 1.1754944e-38, %v868
        %v870 = vsel %vm867, %v869, %v865
        %v871 = vrcp.pop %v670
        %v872 = vmul.f32 %v670, %v871
        %v873 = vsub.f32 1.0, %v872
        %v874 = vmul.f32 %v871, %v873
        %v875 = vadd.f32 %v871, %v874
        %vm876 = vweird.f32 %v670
        %vm877 = vweird.f32 %v871
        %vm878 = vmor %vm876, %vm877
        %v879 = vsel %vm878, %v871, %v875
        %v880 = vand.u32 2147483647, %v670
        %vm881 = vcmp.eq.f32.partialorder %v880, 8.507059e+37
        %v882 = vand.u32 %v670, 2147483648
        %v883 = vor.u32 1.1754944e-38, %v882
        %v884 = vsel %vm881, %v883, %v879
        %v885 = vrcp.pop %v671
        %v886 = vmul.f32 %v671, %v885
        %v887 = vsub.f32 1.0, %v886
        %v888 = vmul.f32 %v885, %v887
        %v889 = vadd.f32 %v885, %v888
        %vm890 = vweird.f32 %v671
        %vm891 = vweird.f32 %v885
        %vm892 = vmor %vm890, %vm891
        %v893 = vsel %vm892, %v885, %v889
        %v894 = vand.u32 2147483647, %v671
        %vm895 = vcmp.eq.f32.partialorder %v894, 8.507059e+37
        %v896 = vand.u32 %v671, 2147483648
        %v897 = vor.u32 1.1754944e-38, %v896
        %v898 = vsel %vm895, %v897, %v893
        %v899 = vrcp.pop %v672
        %v900 = vmul.f32 %v672, %v899
        %v901 = vsub.f32 1.0, %v900
        %v902 = vmul.f32 %v899, %v901
        %v903 = vadd.f32 %v899, %v902
        %vm904 = vweird.f32 %v672
        %vm905 = vweird.f32 %v899
        %vm906 = vmor %vm904, %vm905
        %v907 = vsel %vm906, %v899, %v903
        %v908 = vand.u32 2147483647, %v672
        %vm909 = vcmp.eq.f32.partialorder %v908, 8.507059e+37
        %v910 = vand.u32 %v672, 2147483648
        %v911 = vor.u32 1.1754944e-38, %v910
        %v912 = vsel %vm909, %v911, %v907
        %v913 = vrcp.pop %v673
        %v914 = vmul.f32 %v673, %v913
        %v915 = vsub.f32 1.0, %v914
        %v916 = vmul.f32 %v913, %v915
        %v917 = vadd.f32 %v913, %v916
        %vm918 = vweird.f32 %v673
        %vm919 = vweird.f32 %v913
        %vm920 = vmor %vm918, %vm919
        %v921 = vsel %vm920, %v913, %v917
        %v922 = vand.u32 2147483647, %v673
        %vm923 = vcmp.eq.f32.partialorder %v922, 8.507059e+37
        %v924 = vand.u32 %v673, 2147483648
        %v925 = vor.u32 1.1754944e-38, %v924
        %v926 = vsel %vm923, %v925, %v921
        %v927 = vrcp.pop %v674
        %v928 = vmul.f32 %v674, %v927
        %v929 = vsub.f32 1.0, %v928
        %v930 = vmul.f32 %v927, %v929
        %v931 = vadd.f32 %v927, %v930
        %vm932 = vweird.f32 %v674
        %vm933 = vweird.f32 %v927
        %vm934 = vmor %vm932, %vm933
        %v935 = vsel %vm934, %v927, %v931
        %v936 = vand.u32 2147483647, %v674
        %vm937 = vcmp.eq.f32.partialorder %v936, 8.507059e+37
        %v938 = vand.u32 %v674, 2147483648
        %v939 = vor.u32 1.1754944e-38, %v938
        %v940 = vsel %vm937, %v939, %v935
        %v941 = vrcp.pop %v675
        %v942 = vmul.f32 %v675, %v941
        %v943 = vsub.f32 1.0, %v942
        %v944 = vmul.f32 %v941, %v943
        %v945 = vadd.f32 %v941, %v944
        %vm946 = vweird.f32 %v675
        %vm947 = vweird.f32 %v941
        %vm948 = vmor %vm946, %vm947
        %v949 = vsel %vm948, %v941, %v945
        %v950 = vand.u32 2147483647, %v675
        %vm951 = vcmp.eq.f32.partialorder %v950, 8.507059e+37
        %v952 = vand.u32 %v675, 2147483648
        %v953 = vor.u32 1.1754944e-38, %v952
        %v954 = vsel %vm951, %v953, %v949
        %v955 = vrcp.pop %v676
        %v956 = vmul.f32 %v676, %v955
        %v957 = vsub.f32 1.0, %v956
        %v958 = vmul.f32 %v955, %v957
        %v959 = vadd.f32 %v955, %v958
        %vm960 = vweird.f32 %v676
        %vm961 = vweird.f32 %v955
        %vm962 = vmor %vm960, %vm961
        %v963 = vsel %vm962, %v955, %v959
        %v964 = vand.u32 2147483647, %v676
        %vm965 = vcmp.eq.f32.partialorder %v964, 8.507059e+37
        %v966 = vand.u32 %v676, 2147483648
        %v967 = vor.u32 1.1754944e-38, %v966
        %v968 = vsel %vm965, %v967, %v963
        %v969 = vrcp.pop %v677
        %v970 = vmul.f32 %v677, %v969
        %v971 = vsub.f32 1.0, %v970
        %v972 = vmul.f32 %v969, %v971
        %v973 = vadd.f32 %v969, %v972
        %vm974 = vweird.f32 %v677
        %vm975 = vweird.f32 %v969
        %vm976 = vmor %vm974, %vm975
        %v977 = vsel %vm976, %v969, %v973
        %v978 = vand.u32 2147483647, %v677
        %vm979 = vcmp.eq.f32.partialorder %v978, 8.507059e+37
        %v980 = vand.u32 %v677, 2147483648
        %v981 = vor.u32 1.1754944e-38, %v980
        %v982 = vsel %vm979, %v981, %v977
        %v983 = vrcp.pop %v678
        %v984 = vmul.f32 %v678, %v983
        %v985 = vsub.f32 1.0, %v984
        %v986 = vmul.f32 %v983, %v985
        %v987 = vadd.f32 %v983, %v986
        %vm988 = vweird.f32 %v678
        %vm989 = vweird.f32 %v983
        %vm990 = vmor %vm988, %vm989
        %v991 = vsel %vm990, %v983, %v987
        %v992 = vand.u32 2147483647, %v678
        %vm993 = vcmp.eq.f32.partialorder %v992, 8.507059e+37
        %v994 = vand.u32 %v678, 2147483648
        %v995 = vor.u32 1.1754944e-38, %v994
        %v996 = vsel %vm993, %v995, %v991
        %v997 = vrcp.pop %v679
        %v998 = vmul.f32 %v679, %v997
        %v999 = vsub.f32 1.0, %v998
        %v1000 = vmul.f32 %v997, %v999
        %v1001 = vadd.f32 %v997, %v1000
        %vm1002 = vweird.f32 %v679
        %vm1003 = vweird.f32 %v997
        %vm1004 = vmor %vm1002, %vm1003
        %v1005 = vsel %vm1004, %v997, %v1001
        %v1006 = vand.u32 2147483647, %v679
        %vm1007 = vcmp.eq.f32.partialorder %v1006, 8.507059e+37
        %v1008 = vand.u32 %v679, 2147483648
        %v1009 = vor.u32 1.1754944e-38, %v1008
        %v1010 = vsel %vm1007, %v1009, %v1005
        %v1011 = vrcp.pop %v680
        %v1012 = vmul.f32 %v680, %v1011
        %v1013 = vsub.f32 1.0, %v1012
        %v1014 = vmul.f32 %v1011, %v1013
        %v1015 = vadd.f32 %v1011, %v1014
        %vm1016 = vweird.f32 %v680
        %vm1017 = vweird.f32 %v1011
        %vm1018 = vmor %vm1016, %vm1017
        %v1019 = vsel %vm1018, %v1011, %v1015
        %v1020 = vand.u32 2147483647, %v680
        %vm1021 = vcmp.eq.f32.partialorder %v1020, 8.507059e+37
        %v1022 = vand.u32 %v680, 2147483648
        %v1023 = vor.u32 1.1754944e-38, %v1022
        %v1024 = vsel %vm1021, %v1023, %v1019
        %v1025 = vrcp.pop %v681
        %v1026 = vmul.f32 %v681, %v1025
        %v1027 = vsub.f32 1.0, %v1026
        %v1028 = vmul.f32 %v1025, %v1027
        %v1029 = vadd.f32 %v1025, %v1028
        %vm1030 = vweird.f32 %v681
        %vm1031 = vweird.f32 %v1025
        %vm1032 = vmor %vm1030, %vm1031
        %v1033 = vsel %vm1032, %v1025, %v1029
        %v1034 = vand.u32 2147483647, %v681
        %vm1035 = vcmp.eq.f32.partialorder %v1034, 8.507059e+37
        %v1036 = vand.u32 %v681, 2147483648
        %v1037 = vor.u32 1.1754944e-38, %v1036
        %v1038 = vsel %vm1035, %v1037, %v1033
        %v1039 = vrcp.pop %v682
        %v1040 = vmul.f32 %v682, %v1039
        %v1041 = vsub.f32 1.0, %v1040
        %v1042 = vmul.f32 %v1039, %v1041
        %v1043 = vadd.f32 %v1039, %v1042
        %vm1044 = vweird.f32 %v682
        %vm1045 = vweird.f32 %v1039
        %vm1046 = vmor %vm1044, %vm1045
        %v1047 = vsel %vm1046, %v1039, %v1043
        %v1048 = vand.u32 2147483647, %v682
        %vm1049 = vcmp.eq.f32.partialorder %v1048, 8.507059e+37
        %v1050 = vand.u32 %v682, 2147483648
        %v1051 = vor.u32 1.1754944e-38, %v1050
        %v1052 = vsel %vm1049, %v1051, %v1047
        %v1053 = vrcp.pop %v683
        %v1054 = vmul.f32 %v683, %v1053
        %v1055 = vsub.f32 1.0, %v1054
        %v1056 = vmul.f32 %v1053, %v1055
        %v1057 = vadd.f32 %v1053, %v1056
        %vm1058 = vweird.f32 %v683
        %vm1059 = vweird.f32 %v1053
        %vm1060 = vmor %vm1058, %vm1059
        %v1061 = vsel %vm1060, %v1053, %v1057
        %v1062 = vand.u32 2147483647, %v683
        %vm1063 = vcmp.eq.f32.partialorder %v1062, 8.507059e+37
        %v1064 = vand.u32 %v683, 2147483648
        %v1065 = vor.u32 1.1754944e-38, %v1064
        %v1066 = vsel %vm1063, %v1065, %v1061
        %v1067 = vrcp.pop %v684
        %v1068 = vmul.f32 %v684, %v1067
        %v1069 = vsub.f32 1.0, %v1068
        %v1070 = vmul.f32 %v1067, %v1069
        %v1071 = vadd.f32 %v1067, %v1070
        %vm1072 = vweird.f32 %v684
        %vm1073 = vweird.f32 %v1067
        %vm1074 = vmor %vm1072, %vm1073
        %v1075 = vsel %vm1074, %v1067, %v1071
        %v1076 = vand.u32 2147483647, %v684
        %vm1077 = vcmp.eq.f32.partialorder %v1076, 8.507059e+37
        %v1078 = vand.u32 %v684, 2147483648
        %v1079 = vor.u32 1.1754944e-38, %v1078
        %v1080 = vsel %vm1077, %v1079, %v1075
        %v1081 = vrcp.pop %v685
        %v1082 = vmul.f32 %v685, %v1081
        %v1083 = vsub.f32 1.0, %v1082
        %v1084 = vmul.f32 %v1081, %v1083
        %v1085 = vadd.f32 %v1081, %v1084
        %vm1086 = vweird.f32 %v685
        %vm1087 = vweird.f32 %v1081
        %vm1088 = vmor %vm1086, %vm1087
        %v1089 = vsel %vm1088, %v1081, %v1085
        %v1090 = vand.u32 2147483647, %v685
        %vm1091 = vcmp.eq.f32.partialorder %v1090, 8.507059e+37
        %v1092 = vand.u32 %v685, 2147483648
        %v1093 = vor.u32 1.1754944e-38, %v1092
        %v1094 = vsel %vm1091, %v1093, %v1089
        %v1095 = vrcp.pop %v686
        %v1096 = vmul.f32 %v686, %v1095
        %v1097 = vsub.f32 1.0, %v1096
        %v1098 = vmul.f32 %v1095, %v1097
        %v1099 = vadd.f32 %v1095, %v1098
        %vm1100 = vweird.f32 %v686
        %vm1101 = vweird.f32 %v1095
        %vm1102 = vmor %vm1100, %vm1101
        %v1103 = vsel %vm1102, %v1095, %v1099
        %v1104 = vand.u32 2147483647, %v686
        %vm1105 = vcmp.eq.f32.partialorder %v1104, 8.507059e+37
        %v1106 = vand.u32 %v686, 2147483648
        %v1107 = vor.u32 1.1754944e-38, %v1106
        %v1108 = vsel %vm1105, %v1107, %v1103
        %v1109 = vrcp.pop %v687
        %v1110 = vmul.f32 %v687, %v1109
        %v1111 = vsub.f32 1.0, %v1110
        %v1112 = vmul.f32 %v1109, %v1111
        %v1113 = vadd.f32 %v1109, %v1112
        %vm1114 = vweird.f32 %v687
        %vm1115 = vweird.f32 %v1109
        %vm1116 = vmor %vm1114, %vm1115
        %v1117 = vsel %vm1116, %v1109, %v1113
        %v1118 = vand.u32 2147483647, %v687
        %vm1119 = vcmp.eq.f32.partialorder %v1118, 8.507059e+37
        %v1120 = vand.u32 %v687, 2147483648
        %v1121 = vor.u32 1.1754944e-38, %v1120
        %v1122 = vsel %vm1119, %v1121, %v1117
        %v1123 = vrcp.pop %v688
        %v1124 = vmul.f32 %v688, %v1123
        %v1125 = vsub.f32 1.0, %v1124
        %v1126 = vmul.f32 %v1123, %v1125
        %v1127 = vadd.f32 %v1123, %v1126
        %vm1128 = vweird.f32 %v688
        %vm1129 = vweird.f32 %v1123
        %vm1130 = vmor %vm1128, %vm1129
        %v1131 = vsel %vm1130, %v1123, %v1127
        %v1132 = vand.u32 2147483647, %v688
        %vm1133 = vcmp.eq.f32.partialorder %v1132, 8.507059e+37
        %v1134 = vand.u32 %v688, 2147483648
        %v1135 = vor.u32 1.1754944e-38, %v1134
        %v1136 = vsel %vm1133, %v1135, %v1131
        %vm1137 = vcmp.ge.f32.partialorder %v497, 0.0
        %vm1138 = vcmp.ge.f32.partialorder %v498, 0.0
        %vm1139 = vcmp.ge.f32.partialorder %v499, 0.0
        %vm1140 = vcmp.ge.f32.partialorder %v500, 0.0
        %vm1141 = vcmp.ge.f32.partialorder %v501, 0.0
        %vm1142 = vcmp.ge.f32.partialorder %v502, 0.0
        %vm1143 = vcmp.ge.f32.partialorder %v503, 0.0
        %vm1144 = vcmp.ge.f32.partialorder %v504, 0.0
        %vm1145 = vcmp.ge.f32.partialorder %v505, 0.0
        %vm1146 = vcmp.ge.f32.partialorder %v506, 0.0
        %vm1147 = vcmp.ge.f32.partialorder %v507, 0.0
        %vm1148 = vcmp.ge.f32.partialorder %v508, 0.0
        %vm1149 = vcmp.ge.f32.partialorder %v509, 0.0
        %vm1150 = vcmp.ge.f32.partialorder %v510, 0.0
        %vm1151 = vcmp.ge.f32.partialorder %v511, 0.0
        %vm1152 = vcmp.ge.f32.partialorder %v512, 0.0
        %vm1153 = vcmp.ge.f32.partialorder %v513, 0.0
        %vm1154 = vcmp.ge.f32.partialorder %v514, 0.0
        %vm1155 = vcmp.ge.f32.partialorder %v515, 0.0
        %vm1156 = vcmp.ge.f32.partialorder %v516, 0.0
        %vm1157 = vcmp.ge.f32.partialorder %v517, 0.0
        %vm1158 = vcmp.ge.f32.partialorder %v518, 0.0
        %vm1159 = vcmp.ge.f32.partialorder %v519, 0.0
        %vm1160 = vcmp.ge.f32.partialorder %v520, 0.0
        %vm1161 = vcmp.ge.f32.partialorder %v521, 0.0
        %vm1162 = vcmp.ge.f32.partialorder %v522, 0.0
        %vm1163 = vcmp.ge.f32.partialorder %v523, 0.0
        %vm1164 = vcmp.ge.f32.partialorder %v524, 0.0
        %vm1165 = vcmp.ge.f32.partialorder %v525, 0.0
        %vm1166 = vcmp.ge.f32.partialorder %v526, 0.0
        %vm1167 = vcmp.ge.f32.partialorder %v527, 0.0
        %vm1168 = vcmp.ge.f32.partialorder %v528, 0.0
        %v1169 = vmul.f32 %v594, %v702
        %v1170 = vmul.f32 %v596, %v716
        %v1171 = vmul.f32 %v598, %v730
        %v1172 = vmul.f32 %v600, %v744
        %v1173 = vmul.f32 %v602, %v758
        %v1174 = vmul.f32 %v604, %v772
        %v1175 = vmul.f32 %v606, %v786
        %v1176 = vmul.f32 %v608, %v800
        %v1177 = vmul.f32 %v610, %v814
        %v1178 = vmul.f32 %v612, %v828
        %v1179 = vmul.f32 %v614, %v842
        %v1180 = vmul.f32 %v616, %v856
        %v1181 = vmul.f32 %v618, %v870
        %v1182 = vmul.f32 %v620, %v884
        %v1183 = vmul.f32 %v622, %v898
        %v1184 = vmul.f32 %v624, %v912
        %v1185 = vmul.f32 %v626, %v926
        %v1186 = vmul.f32 %v628, %v940
        %v1187 = vmul.f32 %v630, %v954
        %v1188 = vmul.f32 %v632, %v968
        %v1189 = vmul.f32 %v634, %v982
        %v1190 = vmul.f32 %v636, %v996
        %v1191 = vmul.f32 %v638, %v1010
        %v1192 = vmul.f32 %v640, %v1024
        %v1193 = vmul.f32 %v642, %v1038
        %v1194 = vmul.f32 %v644, %v1052
        %v1195 = vmul.f32 %v646, %v1066
        %v1196 = vmul.f32 %v648, %v1080
        %v1197 = vmul.f32 %v650, %v1094
        %v1198 = vmul.f32 %v652, %v1108
        %v1199 = vmul.f32 %v654, %v1122
        %v1200 = vmul.f32 %v656, %v1136
        %v1201 = vsel %vm1137, %v702, %v1169
        %v1202 = vsel %vm1138, %v716, %v1170
        %v1203 = vsel %vm1139, %v730, %v1171
        %v1204 = vsel %vm1140, %v744, %v1172
        %v1205 = vsel %vm1141, %v758, %v1173
        %v1206 = vsel %vm1142, %v772, %v1174
        %v1207 = vsel %vm1143, %v786, %v1175
        %v1208 = vsel %vm1144, %v800, %v1176
        %v1209 = vsel %vm1145, %v814, %v1177
        %v1210 = vsel %vm1146, %v828, %v1178
        %v1211 = vsel %vm1147, %v842, %v1179
        %v1212 = vsel %vm1148, %v856, %v1180
        %v1213 = vsel %vm1149, %v870, %v1181
        %v1214 = vsel %vm1150, %v884, %v1182
        %v1215 = vsel %vm1151, %v898, %v1183
        %v1216 = vsel %vm1152, %v912, %v1184
        %v1217 = vsel %vm1153, %v926, %v1185
        %v1218 = vsel %vm1154, %v940, %v1186
        %v1219 = vsel %vm1155, %v954, %v1187
        %v1220 = vsel %vm1156, %v968, %v1188
        %v1221 = vsel %vm1157, %v982, %v1189
        %v1222 = vsel %vm1158, %v996, %v1190
        %v1223 = vsel %vm1159, %v1010, %v1191
        %v1224 = vsel %vm1160, %v1024, %v1192
        %v1225 = vsel %vm1161, %v1038, %v1193
        %v1226 = vsel %vm1162, %v1052, %v1194
        %v1227 = vsel %vm1163, %v1066, %v1195
        %v1228 = vsel %vm1164, %v1080, %v1196
        %v1229 = vsel %vm1165, %v1094, %v1197
        %v1230 = vsel %vm1166, %v1108, %v1198
        %v1231 = vsel %vm1167, %v1122, %v1199
        %v1232 = vsel %vm1168, %v1136, %v1200
        %vm1233 = vcmask 7168
        %1234 = vst.msk [vmem:[%s256] sm:$0xff] %vm1233, %v1201
        %1235 = vst.msk [vmem:[%s256 + $0x8] sm:$0xff] %vm1233, %v1202
        %1236 = vst.msk [vmem:[%s256 + $0x10] sm:$0xff] %vm1233, %v1203
        %1237 = vst.msk [vmem:[%s256 + $0x18] sm:$0xff] %vm1233, %v1204
        %1238 = vst.msk [vmem:[%s256 + $0x20] sm:$0xff] %vm1233, %v1205
        %1239 = vst.msk [vmem:[%s256 + $0x28] sm:$0xff] %vm1233, %v1206
        %1240 = vst.msk [vmem:[%s256 + $0x30] sm:$0xff] %vm1233, %v1207
        %1241 = vst.msk [vmem:[%s256 + $0x38] sm:$0xff] %vm1233, %v1208
        %1242 = vst.msk [vmem:[%s256 + $0x40] sm:$0xff] %vm1233, %v1209
        %1243 = vst.msk [vmem:[%s256 + $0x48] sm:$0xff] %vm1233, %v1210
        %1244 = vst.msk [vmem:[%s256 + $0x50] sm:$0xff] %vm1233, %v1211
        %1245 = vst.msk [vmem:[%s256 + $0x58] sm:$0xff] %vm1233, %v1212
        %1246 = vst.msk [vmem:[%s256 + $0x60] sm:$0xff] %vm1233, %v1213
        %1247 = vst.msk [vmem:[%s256 + $0x68] sm:$0xff] %vm1233, %v1214
        %1248 = vst.msk [vmem:[%s256 + $0x70] sm:$0xff] %vm1233, %v1215
        %1249 = vst.msk [vmem:[%s256 + $0x78] sm:$0xff] %vm1233, %v1216
        %1250 = vst.msk [vmem:[%s256 + $0x80] sm:$0xff] %vm1233, %v1217
        %1251 = vst.msk [vmem:[%s256 + $0x88] sm:$0xff] %vm1233, %v1218
        %1252 = vst.msk [vmem:[%s256 + $0x90] sm:$0xff] %vm1233, %v1219
        %1253 = vst.msk [vmem:[%s256 + $0x98] sm:$0xff] %vm1233, %v1220
        %1254 = vst.msk [vmem:[%s256 + $0xa0] sm:$0xff] %vm1233, %v1221
        %1255 = vst.msk [vmem:[%s256 + $0xa8] sm:$0xff] %vm1233, %v1222
        %1256 = vst.msk [vmem:[%s256 + $0xb0] sm:$0xff] %vm1233, %v1223
        %1257 = vst.msk [vmem:[%s256 + $0xb8] sm:$0xff] %vm1233, %v1224
        %1258 = vst.msk [vmem:[%s256 + $0xc0] sm:$0xff] %vm1233, %v1225
        %1259 = vst.msk [vmem:[%s256 + $0xc8] sm:$0xff] %vm1233, %v1226
        %1260 = vst.msk [vmem:[%s256 + $0xd0] sm:$0xff] %vm1233, %v1227
        %1261 = vst.msk [vmem:[%s256 + $0xd8] sm:$0xff] %vm1233, %v1228
        %1262 = vst.msk [vmem:[%s256 + $0xe0] sm:$0xff] %vm1233, %v1229
        %1263 = vst.msk [vmem:[%s256 + $0xe8] sm:$0xff] %vm1233, %v1230
        %1264 = vst.msk [vmem:[%s256 + $0xf0] sm:$0xff] %vm1233, %v1231
        %1265 = vst.msk [vmem:[%s256 + $0xf8] sm:$0xff] %vm1233, %v1232
        %v1266 = vld [vmem:[%s284] sm:$0xff]
        %v1267 = vld [vmem:[%s284 + $0x8] sm:$0xff]
        %v1268 = vld [vmem:[%s284 + $0x10] sm:$0xff]
        %v1269 = vld [vmem:[%s284 + $0x18] sm:$0xff]
        %v1270 = vld [vmem:[%s284 + $0x20] sm:$0xff]
        %v1271 = vld [vmem:[%s284 + $0x28] sm:$0xff]
        %v1272 = vld [vmem:[%s284 + $0x30] sm:$0xff]
        %v1273 = vld [vmem:[%s284 + $0x38] sm:$0xff]
        %v1274 = vld [vmem:[%s284 + $0x40] sm:$0xff]
        %v1275 = vld [vmem:[%s284 + $0x48] sm:$0xff]
        %v1276 = vld [vmem:[%s284 + $0x50] sm:$0xff]
        %v1277 = vld [vmem:[%s284 + $0x58] sm:$0xff]
        %v1278 = vld [vmem:[%s284 + $0x60] sm:$0xff]
        %v1279 = vld [vmem:[%s284 + $0x68] sm:$0xff]
        %v1280 = vld [vmem:[%s284 + $0x70] sm:$0xff]
        %v1281 = vld [vmem:[%s284 + $0x78] sm:$0xff]
        %v1282 = vld [vmem:[%s284 + $0x80] sm:$0xff]
        %v1283 = vld [vmem:[%s284 + $0x88] sm:$0xff]
        %v1284 = vld [vmem:[%s284 + $0x90] sm:$0xff]
        %v1285 = vld [vmem:[%s284 + $0x98] sm:$0xff]
        %v1286 = vld [vmem:[%s284 + $0xa0] sm:$0xff]
        %v1287 = vld [vmem:[%s284 + $0xa8] sm:$0xff]
        %v1288 = vld [vmem:[%s284 + $0xb0] sm:$0xff]
        %v1289 = vld [vmem:[%s284 + $0xb8] sm:$0xff]
        %v1290 = vld [vmem:[%s284 + $0xc0] sm:$0xff]
        %v1291 = vld [vmem:[%s284 + $0xc8] sm:$0xff]
        %v1292 = vld [vmem:[%s284 + $0xd0] sm:$0xff]
        %v1293 = vld [vmem:[%s284 + $0xd8] sm:$0xff]
        %v1294 = vld [vmem:[%s284 + $0xe0] sm:$0xff]
        %v1295 = vld [vmem:[%s284 + $0xe8] sm:$0xff]
        %v1296 = vld [vmem:[%s284 + $0xf0] sm:$0xff]
        %v1297 = vld [vmem:[%s284 + $0xf8] sm:$0xff]
        %vm1298 = vcmp.ne.s32.totalorder %v1266, 4294967295
        %vm1299 = vcmp.ne.s32.totalorder %v1267, 4294967295
        %vm1300 = vcmp.ne.s32.totalorder %v1268, 4294967295
        %vm1301 = vcmp.ne.s32.totalorder %v1269, 4294967295
        %vm1302 = vcmp.ne.s32.totalorder %v1270, 4294967295
        %vm1303 = vcmp.ne.s32.totalorder %v1271, 4294967295
        %vm1304 = vcmp.ne.s32.totalorder %v1272, 4294967295
        %vm1305 = vcmp.ne.s32.totalorder %v1273, 4294967295
        %vm1306 = vcmp.ne.s32.totalorder %v1274, 4294967295
        %vm1307 = vcmp.ne.s32.totalorder %v1275, 4294967295
        %vm1308 = vcmp.ne.s32.totalorder %v1276, 4294967295
        %vm1309 = vcmp.ne.s32.totalorder %v1277, 4294967295
        %vm1310 = vcmp.ne.s32.totalorder %v1278, 4294967295
        %vm1311 = vcmp.ne.s32.totalorder %v1279, 4294967295
        %vm1312 = vcmp.ne.s32.totalorder %v1280, 4294967295
        %vm1313 = vcmp.ne.s32.totalorder %v1281, 4294967295
        %vm1314 = vcmp.ne.s32.totalorder %v1282, 4294967295
        %vm1315 = vcmp.ne.s32.totalorder %v1283, 4294967295
        %vm1316 = vcmp.ne.s32.totalorder %v1284, 4294967295
        %vm1317 = vcmp.ne.s32.totalorder %v1285, 4294967295
        %vm1318 = vcmp.ne.s32.totalorder %v1286, 4294967295
        %vm1319 = vcmp.ne.s32.totalorder %v1287, 4294967295
        %vm1320 = vcmp.ne.s32.totalorder %v1288, 4294967295
        %vm1321 = vcmp.ne.s32.totalorder %v1289, 4294967295
        %vm1322 = vcmp.ne.s32.totalorder %v1290, 4294967295
        %vm1323 = vcmp.ne.s32.totalorder %v1291, 4294967295
        %vm1324 = vcmp.ne.s32.totalorder %v1292, 4294967295
        %vm1325 = vcmp.ne.s32.totalorder %v1293, 4294967295
        %vm1326 = vcmp.ne.s32.totalorder %v1294, 4294967295
        %vm1327 = vcmp.ne.s32.totalorder %v1295, 4294967295
        %vm1328 = vcmp.ne.s32.totalorder %v1296, 4294967295
        %vm1329 = vcmp.ne.s32.totalorder %v1297, 4294967295
        %v1330 = vsel %vm1298, 1, 0
        %v1331 = vsel %vm1299, 1, 0
        %v1332 = vsel %vm1300, 1, 0
        %v1333 = vsel %vm1301, 1, 0
        %v1334 = vsel %vm1302, 1, 0
        %v1335 = vsel %vm1303, 1, 0
        %v1336 = vsel %vm1304, 1, 0
        %v1337 = vsel %vm1305, 1, 0
        %v1338 = vsel %vm1306, 1, 0
        %v1339 = vsel %vm1307, 1, 0
        %v1340 = vsel %vm1308, 1, 0
        %v1341 = vsel %vm1309, 1, 0
        %v1342 = vsel %vm1310, 1, 0
        %v1343 = vsel %vm1311, 1, 0
        %v1344 = vsel %vm1312, 1, 0
        %v1345 = vsel %vm1313, 1, 0
        %v1346 = vsel %vm1314, 1, 0
        %v1347 = vsel %vm1315, 1, 0
        %v1348 = vsel %vm1316, 1, 0
        %v1349 = vsel %vm1317, 1, 0
        %v1350 = vsel %vm1318, 1, 0
        %v1351 = vsel %vm1319, 1, 0
        %v1352 = vsel %vm1320, 1, 0
        %v1353 = vsel %vm1321, 1, 0
        %v1354 = vsel %vm1322, 1, 0
        %v1355 = vsel %vm1323, 1, 0
        %v1356 = vsel %vm1324, 1, 0
        %v1357 = vsel %vm1325, 1, 0
        %v1358 = vsel %vm1326, 1, 0
        %v1359 = vsel %vm1327, 1, 0
        %v1360 = vsel %vm1328, 1, 0
        %v1361 = vsel %vm1329, 1, 0
        %v1362 = vcvt.s32.f32 %v1330
        %v1363 = vcvt.s32.f32 %v1331
        %v1364 = vcvt.s32.f32 %v1332
        %v1365 = vcvt.s32.f32 %v1333
        %v1366 = vcvt.s32.f32 %v1334
        %v1367 = vcvt.s32.f32 %v1335
        %v1368 = vcvt.s32.f32 %v1336
        %v1369 = vcvt.s32.f32 %v1337
        %v1370 = vcvt.s32.f32 %v1338
        %v1371 = vcvt.s32.f32 %v1339
        %v1372 = vcvt.s32.f32 %v1340
        %v1373 = vcvt.s32.f32 %v1341
        %v1374 = vcvt.s32.f32 %v1342
        %v1375 = vcvt.s32.f32 %v1343
        %v1376 = vcvt.s32.f32 %v1344
        %v1377 = vcvt.s32.f32 %v1345
        %v1378 = vcvt.s32.f32 %v1346
        %v1379 = vcvt.s32.f32 %v1347
        %v1380 = vcvt.s32.f32 %v1348
        %v1381 = vcvt.s32.f32 %v1349
        %v1382 = vcvt.s32.f32 %v1350
        %v1383 = vcvt.s32.f32 %v1351
        %v1384 = vcvt.s32.f32 %v1352
        %v1385 = vcvt.s32.f32 %v1353
        %v1386 = vcvt.s32.f32 %v1354
        %v1387 = vcvt.s32.f32 %v1355
        %v1388 = vcvt.s32.f32 %v1356
        %v1389 = vcvt.s32.f32 %v1357
        %v1390 = vcvt.s32.f32 %v1358
        %v1391 = vcvt.s32.f32 %v1359
        %v1392 = vcvt.s32.f32 %v1360
        %v1393 = vcvt.s32.f32 %v1361
        %v1394 = vmax.f32 %v497, 0.0
        %v1395 = vmax.f32 %v498, 0.0
        %v1396 = vmax.f32 %v499, 0.0
        %v1397 = vmax.f32 %v500, 0.0
        %v1398 = vmax.f32 %v501, 0.0
        %v1399 = vmax.f32 %v502, 0.0
        %v1400 = vmax.f32 %v503, 0.0
        %v1401 = vmax.f32 %v504, 0.0
        %v1402 = vmax.f32 %v505, 0.0
        %v1403 = vmax.f32 %v506, 0.0
        %v1404 = vmax.f32 %v507, 0.0
        %v1405 = vmax.f32 %v508, 0.0
        %v1406 = vmax.f32 %v509, 0.0
        %v1407 = vmax.f32 %v510, 0.0
        %v1408 = vmax.f32 %v511, 0.0
        %v1409 = vmax.f32 %v512, 0.0
        %v1410 = vmax.f32 %v513, 0.0
        %v1411 = vmax.f32 %v514, 0.0
        %v1412 = vmax.f32 %v515, 0.0
        %v1413 = vmax.f32 %v516, 0.0
        %v1414 = vmax.f32 %v517, 0.0
        %v1415 = vmax.f32 %v518, 0.0
        %v1416 = vmax.f32 %v519, 0.0
        %v1417 = vmax.f32 %v520, 0.0
        %v1418 = vmax.f32 %v521, 0.0
        %v1419 = vmax.f32 %v522, 0.0
        %v1420 = vmax.f32 %v523, 0.0
        %v1421 = vmax.f32 %v524, 0.0
        %v1422 = vmax.f32 %v525, 0.0
        %v1423 = vmax.f32 %v526, 0.0
        %v1424 = vmax.f32 %v527, 0.0
        %v1425 = vmax.f32 %v528, 0.0
        %v1426 = vlog2.pop %v657
        %v1427 = vmul.f32 %v1426, 0.6931472
        %v1428 = vlog2.pop %v658
        %v1429 = vmul.f32 %v1428, 0.6931472
        %v1430 = vlog2.pop %v659
        %v1431 = vmul.f32 %v1430, 0.6931472
        %v1432 = vlog2.pop %v660
        %v1433 = vmul.f32 %v1432, 0.6931472
        %v1434 = vlog2.pop %v661
        %v1435 = vmul.f32 %v1434, 0.6931472
        %v1436 = vlog2.pop %v662
        %v1437 = vmul.f32 %v1436, 0.6931472
        %v1438 = vlog2.pop %v663
        %v1439 = vmul.f32 %v1438, 0.6931472
        %v1440 = vlog2.pop %v664
        %v1441 = vmul.f32 %v1440, 0.6931472
        %v1442 = vlog2.pop %v665
        %v1443 = vmul.f32 %v1442, 0.6931472
        %v1444 = vlog2.pop %v666
        %v1445 = vmul.f32 %v1444, 0.6931472
        %v1446 = vlog2.pop %v667
        %v1447 = vmul.f32 %v1446, 0.6931472
        %v1448 = vlog2.pop %v668
        %v1449 = vmul.f32 %v1448, 0.6931472
        %v1450 = vlog2.pop %v669
        %v1451 = vmul.f32 %v1450, 0.6931472
        %v1452 = vlog2.pop %v670
        %v1453 = vmul.f32 %v1452, 0.6931472
        %v1454 = vlog2.pop %v671
        %v1455 = vmul.f32 %v1454, 0.6931472
        %v1456 = vlog2.pop %v672
        %v1457 = vmul.f32 %v1456, 0.6931472
        %v1458 = vlog2.pop %v673
        %v1459 = vmul.f32 %v1458, 0.6931472
        %v1460 = vlog2.pop %v674
        %v1461 = vmul.f32 %v1460, 0.6931472
        %v1462 = vlog2.pop %v675
        %v1463 = vmul.f32 %v1462, 0.6931472
        %v1464 = vlog2.pop %v676
        %v1465 = vmul.f32 %v1464, 0.6931472
        %v1466 = vlog2.pop %v677
        %v1467 = vmul.f32 %v1466, 0.6931472
        %v1468 = vlog2.pop %v678
        %v1469 = vmul.f32 %v1468, 0.6931472
        %v1470 = vlog2.pop %v679
        %v1471 = vmul.f32 %v1470, 0.6931472
        %v1472 = vlog2.pop %v680
        %v1473 = vmul.f32 %v1472, 0.6931472
        %v1474 = vlog2.pop %v681
        %v1475 = vmul.f32 %v1474, 0.6931472
        %v1476 = vlog2.pop %v682
        %v1477 = vmul.f32 %v1476, 0.6931472
        %v1478 = vlog2.pop %v683
        %v1479 = vmul.f32 %v1478, 0.6931472
        %v1480 = vlog2.pop %v684
        %v1481 = vmul.f32 %v1480, 0.6931472
        %v1482 = vlog2.pop %v685
        %v1483 = vmul.f32 %v1482, 0.6931472
        %v1484 = vlog2.pop %v686
        %v1485 = vmul.f32 %v1484, 0.6931472
        %v1486 = vlog2.pop %v687
        %v1487 = vmul.f32 %v1486, 0.6931472
        %v1488 = vlog2.pop %v688
        %v1489 = vmul.f32 %v1488, 0.6931472
        %v1490 = vadd.f32 %v1394, %v1427
        %v1491 = vadd.f32 %v1395, %v1429
        %v1492 = vadd.f32 %v1396, %v1431
        %v1493 = vadd.f32 %v1397, %v1433
        %v1494 = vadd.f32 %v1398, %v1435
        %v1495 = vadd.f32 %v1399, %v1437
        %v1496 = vadd.f32 %v1400, %v1439
        %v1497 = vadd.f32 %v1401, %v1441
        %v1498 = vadd.f32 %v1402, %v1443
        %v1499 = vadd.f32 %v1403, %v1445
        %v1500 = vadd.f32 %v1404, %v1447
        %v1501 = vadd.f32 %v1405, %v1449
        %v1502 = vadd.f32 %v1406, %v1451
        %v1503 = vadd.f32 %v1407, %v1453
        %v1504 = vadd.f32 %v1408, %v1455
        %v1505 = vadd.f32 %v1409, %v1457
        %v1506 = vadd.f32 %v1410, %v1459
        %v1507 = vadd.f32 %v1411, %v1461
        %v1508 = vadd.f32 %v1412, %v1463
        %v1509 = vadd.f32 %v1413, %v1465
        %v1510 = vadd.f32 %v1414, %v1467
        %v1511 = vadd.f32 %v1415, %v1469
        %v1512 = vadd.f32 %v1416, %v1471
        %v1513 = vadd.f32 %v1417, %v1473
        %v1514 = vadd.f32 %v1418, %v1475
        %v1515 = vadd.f32 %v1419, %v1477
        %v1516 = vadd.f32 %v1420, %v1479
        %v1517 = vadd.f32 %v1421, %v1481
        %v1518 = vadd.f32 %v1422, %v1483
        %v1519 = vadd.f32 %v1423, %v1485
        %v1520 = vadd.f32 %v1424, %v1487
        %v1521 = vadd.f32 %v1425, %v1489
        %v1522 = vmul.f32 %v1362, %v497
        %v1523 = vmul.f32 %v1363, %v498
        %v1524 = vmul.f32 %v1364, %v499
        %v1525 = vmul.f32 %v1365, %v500
        %v1526 = vmul.f32 %v1366, %v501
        %v1527 = vmul.f32 %v1367, %v502
        %v1528 = vmul.f32 %v1368, %v503
        %v1529 = vmul.f32 %v1369, %v504
        %v1530 = vmul.f32 %v1370, %v505
        %v1531 = vmul.f32 %v1371, %v506
        %v1532 = vmul.f32 %v1372, %v507
        %v1533 = vmul.f32 %v1373, %v508
        %v1534 = vmul.f32 %v1374, %v509
        %v1535 = vmul.f32 %v1375, %v510
        %v1536 = vmul.f32 %v1376, %v511
        %v1537 = vmul.f32 %v1377, %v512
        %v1538 = vmul.f32 %v1378, %v513
        %v1539 = vmul.f32 %v1379, %v514
        %v1540 = vmul.f32 %v1380, %v515
        %v1541 = vmul.f32 %v1381, %v516
        %v1542 = vmul.f32 %v1382, %v517
        %v1543 = vmul.f32 %v1383, %v518
        %v1544 = vmul.f32 %v1384, %v519
        %v1545 = vmul.f32 %v1385, %v520
        %v1546 = vmul.f32 %v1386, %v521
        %v1547 = vmul.f32 %v1387, %v522
        %v1548 = vmul.f32 %v1388, %v523
        %v1549 = vmul.f32 %v1389, %v524
        %v1550 = vmul.f32 %v1390, %v525
        %v1551 = vmul.f32 %v1391, %v526
        %v1552 = vmul.f32 %v1392, %v527
        %v1553 = vmul.f32 %v1393, %v528
        %v1554 = vsub.f32 %v1490, %v1522
        %v1555 = vsub.f32 %v1491, %v1523
        %v1556 = vsub.f32 %v1492, %v1524
        %v1557 = vsub.f32 %v1493, %v1525
        %v1558 = vsub.f32 %v1494, %v1526
        %v1559 = vsub.f32 %v1495, %v1527
        %v1560 = vsub.f32 %v1496, %v1528
        %v1561 = vsub.f32 %v1497, %v1529
        %v1562 = vsub.f32 %v1498, %v1530
        %v1563 = vsub.f32 %v1499, %v1531
        %v1564 = vsub.f32 %v1500, %v1532
        %v1565 = vsub.f32 %v1501, %v1533
        %v1566 = vsub.f32 %v1502, %v1534
        %v1567 = vsub.f32 %v1503, %v1535
        %v1568 = vsub.f32 %v1504, %v1536
        %v1569 = vsub.f32 %v1505, %v1537
        %v1570 = vsub.f32 %v1506, %v1538
        %v1571 = vsub.f32 %v1507, %v1539
        %v1572 = vsub.f32 %v1508, %v1540
        %v1573 = vsub.f32 %v1509, %v1541
        %v1574 = vsub.f32 %v1510, %v1542
        %v1575 = vsub.f32 %v1511, %v1543
        %v1576 = vsub.f32 %v1512, %v1544
        %v1577 = vsub.f32 %v1513, %v1545
        %v1578 = vsub.f32 %v1514, %v1546
        %v1579 = vsub.f32 %v1515, %v1547
        %v1580 = vsub.f32 %v1516, %v1548
        %v1581 = vsub.f32 %v1517, %v1549
        %v1582 = vsub.f32 %v1518, %v1550
        %v1583 = vsub.f32 %v1519, %v1551
        %v1584 = vsub.f32 %v1520, %v1552
        %v1585 = vsub.f32 %v1521, %v1553
        %v1586 = vlaneseq
        %v1587 = vshrl.u32 %v1586, 7
        %v1588 = vadd.s32 %v1587, 8
        %v1589 = vadd.s32 %v1587, 16
        %v1590 = vadd.s32 %v1587, 24
        %v1591 = vadd.s32 %v1587, 32
        %v1592 = vadd.s32 %v1587, 40
        %v1593 = vadd.s32 %v1587, 48
        %v1594 = vadd.s32 %v1587, 56
        %v1595 = vadd.s32 %v1587, 64
        %v1596 = vadd.s32 %v1587, 72
        %v1597 = vadd.s32 %v1587, 80
        %v1598 = vadd.s32 %v1587, 88
        %v1599 = vadd.s32 %v1587, 96
        %v1600 = vadd.s32 %v1587, 104
        %v1601 = vadd.s32 %v1587, 112
        %v1602 = vadd.s32 %v1587, 120
        %v1603 = vadd.s32 %v1587, 128
        %v1604 = vadd.s32 %v1587, 136
        %v1605 = vadd.s32 %v1587, 144
        %v1606 = vadd.s32 %v1587, 152
        %v1607 = vadd.s32 %v1587, 160
        %v1608 = vadd.s32 %v1587, 168
        %v1609 = vadd.s32 %v1587, 176
        %v1610 = vadd.s32 %v1587, 184
        %v1611 = vadd.s32 %v1587, 192
        %v1612 = vadd.s32 %v1587, 200
        %v1613 = vadd.s32 %v1587, 208
        %v1614 = vadd.s32 %v1587, 216
        %v1615 = vadd.s32 %v1587, 224
        %v1616 = vadd.s32 %v1587, 232
        %v1617 = vadd.s32 %v1587, 240
        %v1618 = vadd.s32 %v1587, 248
        %s1619 = smul.u32 %s18, 256
        %v1620 = vstv %s1619
        %v1621 = vadd.s32 %v1587, %v1620
        %v1622 = vadd.s32 %v1588, %v1620
        %v1623 = vadd.s32 %v1589, %v1620
        %v1624 = vadd.s32 %v1590, %v1620
        %v1625 = vadd.s32 %v1591, %v1620
        %v1626 = vadd.s32 %v1592, %v1620
        %v1627 = vadd.s32 %v1593, %v1620
        %v1628 = vadd.s32 %v1594, %v1620
        %v1629 = vadd.s32 %v1595, %v1620
        %v1630 = vadd.s32 %v1596, %v1620
        %v1631 = vadd.s32 %v1597, %v1620
        %v1632 = vadd.s32 %v1598, %v1620
        %v1633 = vadd.s32 %v1599, %v1620
        %v1634 = vadd.s32 %v1600, %v1620
        %v1635 = vadd.s32 %v1601, %v1620
        %v1636 = vadd.s32 %v1602, %v1620
        %v1637 = vadd.s32 %v1603, %v1620
        %v1638 = vadd.s32 %v1604, %v1620
        %v1639 = vadd.s32 %v1605, %v1620
        %v1640 = vadd.s32 %v1606, %v1620
        %v1641 = vadd.s32 %v1607, %v1620
        %v1642 = vadd.s32 %v1608, %v1620
        %v1643 = vadd.s32 %v1609, %v1620
        %v1644 = vadd.s32 %v1610, %v1620
        %v1645 = vadd.s32 %v1611, %v1620
        %v1646 = vadd.s32 %v1612, %v1620
        %v1647 = vadd.s32 %v1613, %v1620
        %v1648 = vadd.s32 %v1614, %v1620
        %v1649 = vadd.s32 %v1615, %v1620
        %v1650 = vadd.s32 %v1616, %v1620
        %v1651 = vadd.s32 %v1617, %v1620
        %v1652 = vadd.s32 %v1618, %v1620
        %vm1653 = vcmp.lt.s32.totalorder %v1621, 1000
        %vm1654 = vcmp.lt.s32.totalorder %v1622, 1000
        %vm1655 = vcmp.lt.s32.totalorder %v1623, 1000
        %vm1656 = vcmp.lt.s32.totalorder %v1624, 1000
        %vm1657 = vcmp.lt.s32.totalorder %v1625, 1000
        %vm1658 = vcmp.lt.s32.totalorder %v1626, 1000
        %vm1659 = vcmp.lt.s32.totalorder %v1627, 1000
        %vm1660 = vcmp.lt.s32.totalorder %v1628, 1000
        %vm1661 = vcmp.lt.s32.totalorder %v1629, 1000
        %vm1662 = vcmp.lt.s32.totalorder %v1630, 1000
        %vm1663 = vcmp.lt.s32.totalorder %v1631, 1000
        %vm1664 = vcmp.lt.s32.totalorder %v1632, 1000
        %vm1665 = vcmp.lt.s32.totalorder %v1633, 1000
        %vm1666 = vcmp.lt.s32.totalorder %v1634, 1000
        %vm1667 = vcmp.lt.s32.totalorder %v1635, 1000
        %vm1668 = vcmp.lt.s32.totalorder %v1636, 1000
        %vm1669 = vcmp.lt.s32.totalorder %v1637, 1000
        %vm1670 = vcmp.lt.s32.totalorder %v1638, 1000
        %vm1671 = vcmp.lt.s32.totalorder %v1639, 1000
        %vm1672 = vcmp.lt.s32.totalorder %v1640, 1000
        %vm1673 = vcmp.lt.s32.totalorder %v1641, 1000
        %vm1674 = vcmp.lt.s32.totalorder %v1642, 1000
        %vm1675 = vcmp.lt.s32.totalorder %v1643, 1000
        %vm1676 = vcmp.lt.s32.totalorder %v1644, 1000
        %vm1677 = vcmp.lt.s32.totalorder %v1645, 1000
        %vm1678 = vcmp.lt.s32.totalorder %v1646, 1000
        %vm1679 = vcmp.lt.s32.totalorder %v1647, 1000
        %vm1680 = vcmp.lt.s32.totalorder %v1648, 1000
        %vm1681 = vcmp.lt.s32.totalorder %v1649, 1000
        %vm1682 = vcmp.lt.s32.totalorder %v1650, 1000
        %vm1683 = vcmp.lt.s32.totalorder %v1651, 1000
        %vm1684 = vcmp.lt.s32.totalorder %v1652, 1000
        %v1685 = vsel %vm1653, %v1554, 0.0
        %v1686 = vsel %vm1654, %v1555, 0.0
        %v1687 = vsel %vm1655, %v1556, 0.0
        %v1688 = vsel %vm1656, %v1557, 0.0
        %v1689 = vsel %vm1657, %v1558, 0.0
        %v1690 = vsel %vm1658, %v1559, 0.0
        %v1691 = vsel %vm1659, %v1560, 0.0
        %v1692 = vsel %vm1660, %v1561, 0.0
        %v1693 = vsel %vm1661, %v1562, 0.0
        %v1694 = vsel %vm1662, %v1563, 0.0
        %v1695 = vsel %vm1663, %v1564, 0.0
        %v1696 = vsel %vm1664, %v1565, 0.0
        %v1697 = vsel %vm1665, %v1566, 0.0
        %v1698 = vsel %vm1666, %v1567, 0.0
        %v1699 = vsel %vm1667, %v1568, 0.0
        %v1700 = vsel %vm1668, %v1569, 0.0
        %v1701 = vsel %vm1669, %v1570, 0.0
        %v1702 = vsel %vm1670, %v1571, 0.0
        %v1703 = vsel %vm1671, %v1572, 0.0
        %v1704 = vsel %vm1672, %v1573, 0.0
        %v1705 = vsel %vm1673, %v1574, 0.0
        %v1706 = vsel %vm1674, %v1575, 0.0
        %v1707 = vsel %vm1675, %v1576, 0.0
        %v1708 = vsel %vm1676, %v1577, 0.0
        %v1709 = vsel %vm1677, %v1578, 0.0
        %v1710 = vsel %vm1678, %v1579, 0.0
        %v1711 = vsel %vm1679, %v1580, 0.0
        %v1712 = vsel %vm1680, %v1581, 0.0
        %v1713 = vsel %vm1681, %v1582, 0.0
        %v1714 = vsel %vm1682, %v1583, 0.0
        %v1715 = vsel %vm1683, %v1584, 0.0
        %v1716 = vsel %vm1684, %v1585, 0.0
        %v1717 = vsel %vm1233, %v1685, 0.0
        %v1718 = vsel %vm1233, %v1686, 0.0
        %v1719 = vadd.f32 %v1717, %v1718
        %v1720 = vsel %vm1233, %v1687, 0.0
        %v1721 = vadd.f32 %v1719, %v1720
        %v1722 = vsel %vm1233, %v1688, 0.0
        %v1723 = vadd.f32 %v1721, %v1722
        %v1724 = vsel %vm1233, %v1689, 0.0
        %v1725 = vadd.f32 %v1723, %v1724
        %v1726 = vsel %vm1233, %v1690, 0.0
        %v1727 = vadd.f32 %v1725, %v1726
        %v1728 = vsel %vm1233, %v1691, 0.0
        %v1729 = vadd.f32 %v1727, %v1728
        %v1730 = vsel %vm1233, %v1692, 0.0
        %v1731 = vadd.f32 %v1729, %v1730
        %v1732 = vsel %vm1233, %v1693, 0.0
        %v1733 = vadd.f32 %v1731, %v1732
        %v1734 = vsel %vm1233, %v1694, 0.0
        %v1735 = vadd.f32 %v1733, %v1734
        %v1736 = vsel %vm1233, %v1695, 0.0
        %v1737 = vadd.f32 %v1735, %v1736
        %v1738 = vsel %vm1233, %v1696, 0.0
        %v1739 = vadd.f32 %v1737, %v1738
        %v1740 = vsel %vm1233, %v1697, 0.0
        %v1741 = vadd.f32 %v1739, %v1740
        %v1742 = vsel %vm1233, %v1698, 0.0
        %v1743 = vadd.f32 %v1741, %v1742
        %v1744 = vsel %vm1233, %v1699, 0.0
        %v1745 = vadd.f32 %v1743, %v1744
        %v1746 = vsel %vm1233, %v1700, 0.0
        %v1747 = vadd.f32 %v1745, %v1746
        %v1748 = vsel %vm1233, %v1701, 0.0
        %v1749 = vadd.f32 %v1747, %v1748
        %v1750 = vsel %vm1233, %v1702, 0.0
        %v1751 = vadd.f32 %v1749, %v1750
        %v1752 = vsel %vm1233, %v1703, 0.0
        %v1753 = vadd.f32 %v1751, %v1752
        %v1754 = vsel %vm1233, %v1704, 0.0
        %v1755 = vadd.f32 %v1753, %v1754
        %v1756 = vsel %vm1233, %v1705, 0.0
        %v1757 = vadd.f32 %v1755, %v1756
        %v1758 = vsel %vm1233, %v1706, 0.0
        %v1759 = vadd.f32 %v1757, %v1758
        %v1760 = vsel %vm1233, %v1707, 0.0
        %v1761 = vadd.f32 %v1759, %v1760
        %v1762 = vsel %vm1233, %v1708, 0.0
        %v1763 = vadd.f32 %v1761, %v1762
        %v1764 = vsel %vm1233, %v1709, 0.0
        %v1765 = vadd.f32 %v1763, %v1764
        %v1766 = vsel %vm1233, %v1710, 0.0
        %v1767 = vadd.f32 %v1765, %v1766
        %v1768 = vsel %vm1233, %v1711, 0.0
        %v1769 = vadd.f32 %v1767, %v1768
        %v1770 = vsel %vm1233, %v1712, 0.0
        %v1771 = vadd.f32 %v1769, %v1770
        %v1772 = vsel %vm1233, %v1713, 0.0
        %v1773 = vadd.f32 %v1771, %v1772
        %v1774 = vsel %vm1233, %v1714, 0.0
        %v1775 = vadd.f32 %v1773, %v1774
        %v1776 = vsel %vm1233, %v1715, 0.0
        %v1777 = vadd.f32 %v1775, %v1776
        %v1778 = vsel %vm1233, %v1716, 0.0
        %v1779 = vadd.f32 %v1777, %v1778
        %1780 = vadd.xlane.f32.xlu0 %v1779
        %v1781 = vpop.xlane.xlu0 %1780
        %v1782 = vrot.slane %v1781, 4
        %v1783 = vadd.f32 %v1781, %v1782
        %v1784 = vrot.slane %v1783, 2
        %v1785 = vadd.f32 %v1783, %v1784
        %v1786 = vrot.slane %v1785, 1
        %v1787 = vadd.f32 %v1785, %v1786
        %s1788 = vtos %v1787
        %v1789 = vstv %s1788
        %vm1790 = vcmask 0
        %1791 = vst.msk [vmem:[%s297] sm:$0x1] %vm1790, %v1789
        %s1792 = sand.u32 %s120, 1
        %s1793 = sand.u32 %s120, 1
        %s1794 = smul.addr %s1793, 256
        %s1795 = scalar_lea.vmem [#allocation3], %s1794
        %p1796 = scmp.lt.s32.totalorder %s18, 3
        %s1797 = scalar_select %p1796, %s18, 3
        %s1798 = scalar_lea.vmem %s5, %s1797
        // Predicated region
        $region37: #{tpu_custom_call.1} parent=35 // pred_check
          %p1799 = pneg %p130
        $region38: #{tpu_custom_call.1} parent=35 // pred_check_branch
          %1801 = sbr.rel (%p1799) target = $region40
        $region39: #{tpu_custom_call.1} parent=35 // pred_region
          %s1802 = smul.u32 32, %s18
          %s1803 = ssub.s32 125, %s1802
          %p1804 = scmp.lt.s32.totalorder %s1803, 32
          %s1805 = scalar_select %p1804, %s1803, 32
          %s1806 = smul.u32 8, %s1805
          %p1807 = scmp.ne.s32.totalorder 0, %s1806
          %s1808 = smul.addr %s1802, 8
          %s1809 = scalar_lea.vmem %s4, %s1808
          // Predicated region
          $region41: #{tpu_custom_call.1} parent=39 // pred_check
            %p1810 = pneg %p1807
          $region42: #{tpu_custom_call.1} parent=39 // pred_check_branch
            %1812 = sbr.rel (%p1810) target = $region44
          $region43: #{tpu_custom_call.1} parent=39 // pred_region
            // Predicated region
            $region45: #{tpu_custom_call.1} parent=43 // pred_check
              _
            $region46: #{tpu_custom_call.1} parent=43 // pred_check_branch
              %1814 = sbr.rel (0) target = $region48
            $region47: #{tpu_custom_call.1} parent=43 // pred_region
              // Predicated region
              $region67: #{tpu_custom_call.1} parent=47 // pred_check
                _
              $region68: #{tpu_custom_call.1} parent=47 // pred_check_branch
                %1926 = sbr.rel (0) target = $region70
              $region69: #{tpu_custom_call.1} parent=47 // pred_region
                %s1927 = sshrl.u32 %s1805, 5
                // While loop
                $region71: #{tpu_custom_call.1} parent=69 // loop_pre_header
                  _
                $region72: #{tpu_custom_call.1} parent=69 // loop_header
                  %s1929 = sphi 0, %s1931
                  %p1930 = scmp.ge.s32.totalorder %s1929, %s1927
                  %s1934 = sphi 0, %s2003
                  %s1935 = sphi %s1795, %s2006
                  %s1936 = sphi %s1809, %s2007
                $region73: #{tpu_custom_call.1} parent=69 // loop_header_branch
                  %1933 = sbr.rel (%p1930) target = $region77
                $region74: #{tpu_custom_call.1} parent=69 // loop_body
                  %v1937 = vld [vmem:[%s1935] sm:$0xff]
                  %1938 = vst [vmem:[%s1936] sm:$0xff] %v1937
                  %v1939 = vld [vmem:[%s1935 + $0x8] sm:$0xff]
                  %1940 = vst [vmem:[%s1936 + $0x8] sm:$0xff] %v1939
                  %v1941 = vld [vmem:[%s1935 + $0x10] sm:$0xff]
                  %1942 = vst [vmem:[%s1936 + $0x10] sm:$0xff] %v1941
                  %v1943 = vld [vmem:[%s1935 + $0x18] sm:$0xff]
                  %1944 = vst [vmem:[%s1936 + $0x18] sm:$0xff] %v1943
                  %v1945 = vld [vmem:[%s1935 + $0x20] sm:$0xff]
                  %1946 = vst [vmem:[%s1936 + $0x20] sm:$0xff] %v1945
                  %v1947 = vld [vmem:[%s1935 + $0x28] sm:$0xff]
                  %1948 = vst [vmem:[%s1936 + $0x28] sm:$0xff] %v1947
                  %v1949 = vld [vmem:[%s1935 + $0x30] sm:$0xff]
                  %1950 = vst [vmem:[%s1936 + $0x30] sm:$0xff] %v1949
                  %v1951 = vld [vmem:[%s1935 + $0x38] sm:$0xff]
                  %1952 = vst [vmem:[%s1936 + $0x38] sm:$0xff] %v1951
                  %v1953 = vld [vmem:[%s1935 + $0x40] sm:$0xff]
                  %1954 = vst [vmem:[%s1936 + $0x40] sm:$0xff] %v1953
                  %v1955 = vld [vmem:[%s1935 + $0x48] sm:$0xff]
                  %1956 = vst [vmem:[%s1936 + $0x48] sm:$0xff] %v1955
                  %v1957 = vld [vmem:[%s1935 + $0x50] sm:$0xff]
                  %1958 = vst [vmem:[%s1936 + $0x50] sm:$0xff] %v1957
                  %v1959 = vld [vmem:[%s1935 + $0x58] sm:$0xff]
                  %1960 = vst [vmem:[%s1936 + $0x58] sm:$0xff] %v1959
                  %v1961 = vld [vmem:[%s1935 + $0x60] sm:$0xff]
                  %1962 = vst [vmem:[%s1936 + $0x60] sm:$0xff] %v1961
                  %v1963 = vld [vmem:[%s1935 + $0x68] sm:$0xff]
                  %1964 = vst [vmem:[%s1936 + $0x68] sm:$0xff] %v1963
                  %v1965 = vld [vmem:[%s1935 + $0x70] sm:$0xff]
                  %1966 = vst [vmem:[%s1936 + $0x70] sm:$0xff] %v1965
                  %v1967 = vld [vmem:[%s1935 + $0x78] sm:$0xff]
                  %1968 = vst [vmem:[%s1936 + $0x78] sm:$0xff] %v1967
                  %v1969 = vld [vmem:[%s1935 + $0x80] sm:$0xff]
                  %1970 = vst [vmem:[%s1936 + $0x80] sm:$0xff] %v1969
                  %v1971 = vld [vmem:[%s1935 + $0x88] sm:$0xff]
                  %1972 = vst [vmem:[%s1936 + $0x88] sm:$0xff] %v1971
                  %v1973 = vld [vmem:[%s1935 + $0x90] sm:$0xff]
                  %1974 = vst [vmem:[%s1936 + $0x90] sm:$0xff] %v1973
                  %v1975 = vld [vmem:[%s1935 + $0x98] sm:$0xff]
                  %1976 = vst [vmem:[%s1936 + $0x98] sm:$0xff] %v1975
                  %v1977 = vld [vmem:[%s1935 + $0xa0] sm:$0xff]
                  %1978 = vst [vmem:[%s1936 + $0xa0] sm:$0xff] %v1977
                  %v1979 = vld [vmem:[%s1935 + $0xa8] sm:$0xff]
                  %1980 = vst [vmem:[%s1936 + $0xa8] sm:$0xff] %v1979
                  %v1981 = vld [vmem:[%s1935 + $0xb0] sm:$0xff]
                  %1982 = vst [vmem:[%s1936 + $0xb0] sm:$0xff] %v1981
                  %v1983 = vld [vmem:[%s1935 + $0xb8] sm:$0xff]
                  %1984 = vst [vmem:[%s1936 + $0xb8] sm:$0xff] %v1983
                  %v1985 = vld [vmem:[%s1935 + $0xc0] sm:$0xff]
                  %1986 = vst [vmem:[%s1936 + $0xc0] sm:$0xff] %v1985
                  %v1987 = vld [vmem:[%s1935 + $0xc8] sm:$0xff]
                  %1988 = vst [vmem:[%s1936 + $0xc8] sm:$0xff] %v1987
                  %v1989 = vld [vmem:[%s1935 + $0xd0] sm:$0xff]
                  %1990 = vst [vmem:[%s1936 + $0xd0] sm:$0xff] %v1989
                  %v1991 = vld [vmem:[%s1935 + $0xd8] sm:$0xff]
                  %1992 = vst [vmem:[%s1936 + $0xd8] sm:$0xff] %v1991
                  %v1993 = vld [vmem:[%s1935 + $0xe0] sm:$0xff]
                  %1994 = vst [vmem:[%s1936 + $0xe0] sm:$0xff] %v1993
                  %v1995 = vld [vmem:[%s1935 + $0xe8] sm:$0xff]
                  %1996 = vst [vmem:[%s1936 + $0xe8] sm:$0xff] %v1995
                  %v1997 = vld [vmem:[%s1935 + $0xf0] sm:$0xff]
                  %1998 = vst [vmem:[%s1936 + $0xf0] sm:$0xff] %v1997
                  %v1999 = vld [vmem:[%s1935 + $0xf8] sm:$0xff]
                  %2000 = vst [vmem:[%s1936 + $0xf8] sm:$0xff] %v1999
                  %s2001 = sadd.s32 1, %s1934
                  %p2002 = scmp.ge.s32.totalorder %s2001, %s1927
                  %s2003 = scalar_select %p2002, 0, %s2001
                  %s2004 = smul.u32 %s2003, 256
                  %s2005 = smul.u32 %s2003, 256
                  %s2006 = scalar_lea.vmem %s1795, %s2004 [#allocation3]
                  %s2007 = scalar_lea.vmem %s1809, %s2005
                $region75: #{tpu_custom_call.1} parent=69 // loop_footer
                  %s1931 = sadd.s32 %s1929, 1
                $region76: #{tpu_custom_call.1} parent=69 // loop_footer_branch
                  %1928 = sbr.rel target = $region72
                $region77: #{tpu_custom_call.1} parent=69 // loop_exit
                  _
                %s2008 = sshrl.u32 %s1805, 5
                %s2009 = sand.u32 %s1805, 31
                %s2010 = smul.u32 %s2008, 32
                %s2011 = smul.u32 8, %s2010
                %s2012 = scalar_lea.vmem %s1795, %s2011 [#allocation3]
                %s2013 = smul.u32 8, %s2010
                %s2014 = scalar_lea.vmem %s1809, %s2013
                // While loop
                $region78: #{tpu_custom_call.1} parent=69 // loop_pre_header
                  _
                $region79: #{tpu_custom_call.1} parent=69 // loop_header
                  %s2016 = sphi 0, %s2018
                  %p2017 = scmp.ge.s32.totalorder %s2016, %s2009
                  %s2021 = sphi 0, %s2028
                  %s2022 = sphi %s2012, %s2031
                  %s2023 = sphi %s2014, %s2032
                $region80: #{tpu_custom_call.1} parent=69 // loop_header_branch
                  %2020 = sbr.rel (%p2017) target = $region84
                $region81: #{tpu_custom_call.1} parent=69 // loop_body
                  %v2024 = vld [vmem:[%s2022] sm:$0xff]
                  %2025 = vst [vmem:[%s2023] sm:$0xff] %v2024
                  %s2026 = sadd.s32 1, %s2021
                  %p2027 = scmp.ge.s32.totalorder %s2026, %s2009
                  %s2028 = scalar_select %p2027, 0, %s2026
                  %s2029 = smul.u32 %s2028, 8
                  %s2030 = smul.u32 %s2028, 8
                  %s2031 = scalar_lea.vmem %s2012, %s2029 [#allocation3]
                  %s2032 = scalar_lea.vmem %s2014, %s2030
                $region82: #{tpu_custom_call.1} parent=69 // loop_footer
                  %s2018 = sadd.s32 %s2016, 1
                $region83: #{tpu_custom_call.1} parent=69 // loop_footer_branch
                  %2015 = sbr.rel target = $region79
                $region84: #{tpu_custom_call.1} parent=69 // loop_exit
                  _
              $region70: #{tpu_custom_call.1} parent=47 // pred_fallthru
                _
              // Predicated region
              $region85: #{tpu_custom_call.1} parent=47 // pred_check
                _
              $region86: #{tpu_custom_call.1} parent=47 // pred_check_branch
                %2034 = sbr.rel target = $region88
              $region87: #{tpu_custom_call.1} parent=47 // pred_region
                _
              $region88: #{tpu_custom_call.1} parent=47 // pred_fallthru
                _
            $region48: #{tpu_custom_call.1} parent=43 // pred_fallthru
              _
            // Predicated region
            $region49: #{tpu_custom_call.1} parent=43 // pred_check
              _
            $region50: #{tpu_custom_call.1} parent=43 // pred_check_branch
              %1816 = sbr.rel target = $region52
            $region51: #{tpu_custom_call.1} parent=43 // pred_region
              %s1818 = ssub.s32 256, 1
              %s1819 = sshrl.u32 %s1805, 5
              // While loop
              $region53: #{tpu_custom_call.1} parent=51 // loop_pre_header
                _
              $region54: #{tpu_custom_call.1} parent=51 // loop_header
                %s1821 = sphi 0, %s1823
                %p1822 = scmp.ge.s32.totalorder %s1821, %s1819
                %s1826 = sphi 0, %s1895
                %s1827 = sphi %s1795, %s1898
                %s1828 = sphi %s1809, %s1899
              $region55: #{tpu_custom_call.1} parent=51 // loop_header_branch
                %1825 = sbr.rel (%p1822) target = $region59
              $region56: #{tpu_custom_call.1} parent=51 // loop_body
                %v1829 = vld [vmem:[%s1827] sm:%s1818]
                %1830 = vst [vmem:[%s1828] sm:%s1818] %v1829
                %v1831 = vld [vmem:[%s1827 + $0x8] sm:%s1818]
                %1832 = vst [vmem:[%s1828 + $0x8] sm:%s1818] %v1831
                %v1833 = vld [vmem:[%s1827 + $0x10] sm:%s1818]
                %1834 = vst [vmem:[%s1828 + $0x10] sm:%s1818] %v1833
                %v1835 = vld [vmem:[%s1827 + $0x18] sm:%s1818]
                %1836 = vst [vmem:[%s1828 + $0x18] sm:%s1818] %v1835
                %v1837 = vld [vmem:[%s1827 + $0x20] sm:%s1818]
                %1838 = vst [vmem:[%s1828 + $0x20] sm:%s1818] %v1837
                %v1839 = vld [vmem:[%s1827 + $0x28] sm:%s1818]
                %1840 = vst [vmem:[%s1828 + $0x28] sm:%s1818] %v1839
                %v1841 = vld [vmem:[%s1827 + $0x30] sm:%s1818]
                %1842 = vst [vmem:[%s1828 + $0x30] sm:%s1818] %v1841
                %v1843 = vld [vmem:[%s1827 + $0x38] sm:%s1818]
                %1844 = vst [vmem:[%s1828 + $0x38] sm:%s1818] %v1843
                %v1845 = vld [vmem:[%s1827 + $0x40] sm:%s1818]
                %1846 = vst [vmem:[%s1828 + $0x40] sm:%s1818] %v1845
                %v1847 = vld [vmem:[%s1827 + $0x48] sm:%s1818]
                %1848 = vst [vmem:[%s1828 + $0x48] sm:%s1818] %v1847
                %v1849 = vld [vmem:[%s1827 + $0x50] sm:%s1818]
                %1850 = vst [vmem:[%s1828 + $0x50] sm:%s1818] %v1849
                %v1851 = vld [vmem:[%s1827 + $0x58] sm:%s1818]
                %1852 = vst [vmem:[%s1828 + $0x58] sm:%s1818] %v1851
                %v1853 = vld [vmem:[%s1827 + $0x60] sm:%s1818]
                %1854 = vst [vmem:[%s1828 + $0x60] sm:%s1818] %v1853
                %v1855 = vld [vmem:[%s1827 + $0x68] sm:%s1818]
                %1856 = vst [vmem:[%s1828 + $0x68] sm:%s1818] %v1855
                %v1857 = vld [vmem:[%s1827 + $0x70] sm:%s1818]
                %1858 = vst [vmem:[%s1828 + $0x70] sm:%s1818] %v1857
                %v1859 = vld [vmem:[%s1827 + $0x78] sm:%s1818]
                %1860 = vst [vmem:[%s1828 + $0x78] sm:%s1818] %v1859
                %v1861 = vld [vmem:[%s1827 + $0x80] sm:%s1818]
                %1862 = vst [vmem:[%s1828 + $0x80] sm:%s1818] %v1861
                %v1863 = vld [vmem:[%s1827 + $0x88] sm:%s1818]
                %1864 = vst [vmem:[%s1828 + $0x88] sm:%s1818] %v1863
                %v1865 = vld [vmem:[%s1827 + $0x90] sm:%s1818]
                %1866 = vst [vmem:[%s1828 + $0x90] sm:%s1818] %v1865
                %v1867 = vld [vmem:[%s1827 + $0x98] sm:%s1818]
                %1868 = vst [vmem:[%s1828 + $0x98] sm:%s1818] %v1867
                %v1869 = vld [vmem:[%s1827 + $0xa0] sm:%s1818]
                %1870 = vst [vmem:[%s1828 + $0xa0] sm:%s1818] %v1869
                %v1871 = vld [vmem:[%s1827 + $0xa8] sm:%s1818]
                %1872 = vst [vmem:[%s1828 + $0xa8] sm:%s1818] %v1871
                %v1873 = vld [vmem:[%s1827 + $0xb0] sm:%s1818]
                %1874 = vst [vmem:[%s1828 + $0xb0] sm:%s1818] %v1873
                %v1875 = vld [vmem:[%s1827 + $0xb8] sm:%s1818]
                %1876 = vst [vmem:[%s1828 + $0xb8] sm:%s1818] %v1875
                %v1877 = vld [vmem:[%s1827 + $0xc0] sm:%s1818]
                %1878 = vst [vmem:[%s1828 + $0xc0] sm:%s1818] %v1877
                %v1879 = vld [vmem:[%s1827 + $0xc8] sm:%s1818]
                %1880 = vst [vmem:[%s1828 + $0xc8] sm:%s1818] %v1879
                %v1881 = vld [vmem:[%s1827 + $0xd0] sm:%s1818]
                %1882 = vst [vmem:[%s1828 + $0xd0] sm:%s1818] %v1881
                %v1883 = vld [vmem:[%s1827 + $0xd8] sm:%s1818]
                %1884 = vst [vmem:[%s1828 + $0xd8] sm:%s1818] %v1883
                %v1885 = vld [vmem:[%s1827 + $0xe0] sm:%s1818]
                %1886 = vst [vmem:[%s1828 + $0xe0] sm:%s1818] %v1885
                %v1887 = vld [vmem:[%s1827 + $0xe8] sm:%s1818]
                %1888 = vst [vmem:[%s1828 + $0xe8] sm:%s1818] %v1887
                %v1889 = vld [vmem:[%s1827 + $0xf0] sm:%s1818]
                %1890 = vst [vmem:[%s1828 + $0xf0] sm:%s1818] %v1889
                %v1891 = vld [vmem:[%s1827 + $0xf8] sm:%s1818]
                %1892 = vst [vmem:[%s1828 + $0xf8] sm:%s1818] %v1891
                %s1893 = sadd.s32 1, %s1826
                %p1894 = scmp.ge.s32.totalorder %s1893, %s1819
                %s1895 = scalar_select %p1894, 0, %s1893
                %s1896 = smul.u32 %s1895, 256
                %s1897 = smul.u32 %s1895, 256
                %s1898 = scalar_lea.vmem %s1795, %s1896 [#allocation3]
                %s1899 = scalar_lea.vmem %s1809, %s1897
              $region57: #{tpu_custom_call.1} parent=51 // loop_footer
                %s1823 = sadd.s32 %s1821, 1
              $region58: #{tpu_custom_call.1} parent=51 // loop_footer_branch
                %1820 = sbr.rel target = $region54
              $region59: #{tpu_custom_call.1} parent=51 // loop_exit
                _
              %s1900 = sshrl.u32 %s1805, 5
              %s1901 = sand.u32 %s1805, 31
              %s1902 = smul.u32 %s1900, 32
              %s1903 = smul.u32 8, %s1902
              %s1904 = scalar_lea.vmem %s1795, %s1903 [#allocation3]
              %s1905 = smul.u32 8, %s1902
              %s1906 = scalar_lea.vmem %s1809, %s1905
              // While loop
              $region60: #{tpu_custom_call.1} parent=51 // loop_pre_header
                _
              $region61: #{tpu_custom_call.1} parent=51 // loop_header
                %s1908 = sphi 0, %s1910
                %p1909 = scmp.ge.s32.totalorder %s1908, %s1901
                %s1913 = sphi 0, %s1920
                %s1914 = sphi %s1904, %s1923
                %s1915 = sphi %s1906, %s1924
              $region62: #{tpu_custom_call.1} parent=51 // loop_header_branch
                %1912 = sbr.rel (%p1909) target = $region66
              $region63: #{tpu_custom_call.1} parent=51 // loop_body
                %v1916 = vld [vmem:[%s1914] sm:%s1818]
                %1917 = vst [vmem:[%s1915] sm:%s1818] %v1916
                %s1918 = sadd.s32 1, %s1913
                %p1919 = scmp.ge.s32.totalorder %s1918, %s1901
                %s1920 = scalar_select %p1919, 0, %s1918
                %s1921 = smul.u32 %s1920, 8
                %s1922 = smul.u32 %s1920, 8
                %s1923 = scalar_lea.vmem %s1904, %s1921 [#allocation3]
                %s1924 = scalar_lea.vmem %s1906, %s1922
              $region64: #{tpu_custom_call.1} parent=51 // loop_footer
                %s1910 = sadd.s32 %s1908, 1
              $region65: #{tpu_custom_call.1} parent=51 // loop_footer_branch
                %1907 = sbr.rel target = $region61
              $region66: #{tpu_custom_call.1} parent=51 // loop_exit
                _
            $region52: #{tpu_custom_call.1} parent=43 // pred_fallthru
              _
          $region44: #{tpu_custom_call.1} parent=39 // pred_fallthru
            _
          %2035 = vnop
        $region40: #{tpu_custom_call.1} parent=35 // pred_fallthru
          _
        // Predicated region
        $region89: #{tpu_custom_call.1} parent=35 // pred_check
          %p2036 = pneg %p156
        $region90: #{tpu_custom_call.1} parent=35 // pred_check_branch
          %2038 = sbr.rel (%p2036) target = $region92
        $region91: #{tpu_custom_call.1} parent=35 // pred_region
          _
        $region92: #{tpu_custom_call.1} parent=35 // pred_fallthru
          _
      $region36: #{tpu_custom_call.1} parent=5 // pred_fallthru
        _
      %p2039 = scmp.le.s32.totalorder 2, %s13
      // Predicated region
      $region93: #{tpu_custom_call.1} parent=5 // pred_check
        %p2040 = pneg %p2039
      $region94: #{tpu_custom_call.1} parent=5 // pred_check_branch
        %2042 = sbr.rel (%p2040) target = $region96
      $region95: #{tpu_custom_call.1} parent=5 // pred_region
        %s2043 = ssub.s32 %s13, 2
        // Predicated region
        $region97: #{tpu_custom_call.1} parent=95 // pred_check
          %p2044 = pneg %p136
        $region98: #{tpu_custom_call.1} parent=95 // pred_check_branch
          %2046 = sbr.rel (%p2044) target = $region100
        $region99: #{tpu_custom_call.1} parent=95 // pred_region
          %s2047 = sand.u32 %s121, 1
          %s2048 = sand.u32 %s121, 1
          %s2049 = smul.addr %s2048, 256
          %s2050 = scalar_lea.vmem [#allocation3], %s2049
        $region100: #{tpu_custom_call.1} parent=95 // pred_fallthru
          _
        // Predicated region
        $region101: #{tpu_custom_call.1} parent=95 // pred_check
          %p2051 = pneg %p162
        $region102: #{tpu_custom_call.1} parent=95 // pred_check_branch
          %2053 = sbr.rel (%p2051) target = $region104
        $region103: #{tpu_custom_call.1} parent=95 // pred_region
          %p2054 = scmp.lt.s32.totalorder %s19, 3
          %s2055 = scalar_select %p2054, %s19, 3
          %s2056 = scalar_lea.vmem %s5, %s2055
        $region104: #{tpu_custom_call.1} parent=95 // pred_fallthru
          _
      $region96: #{tpu_custom_call.1} parent=5 // pred_fallthru
        _
    $region6: #{tpu_custom_call.1} parent=1 // loop_footer
      %s17 = sadd.s32 1, %s13
    $region7: #{tpu_custom_call.1} parent=1 // loop_footer_branch
      %12 = sbr.rel target = $region3
    $region8: #{tpu_custom_call.1} parent=1 // loop_exit
      _

</llo_original>
